<compile_context>
chip_gen: v6e
topology: v6e:2x2x1
jax: 0.10.0
libtpu: 0.0.40
codegen_flags: <defaults>
</compile_context>

<pallas_src>
import functools
import math

import jax
import jax.numpy as jnp
from jax.experimental import pallas as pl
from jax.experimental.pallas import tpu as pltpu


# ---------------------------------------------------------------------------
# Hardware-aware defaults (v7x has 64 MiB VMEM per TC, v5e/v6e have 128 MiB).
# ---------------------------------------------------------------------------
def _tpu_vmem_bytes():
    try:
        return int(getattr(pltpu.get_tpu_info(), "vmem_capacity_bytes"))
    except Exception:
        return 64 << 20  # conservative: assume v7x-sized VMEM


_VMEM_BYTES = _tpu_vmem_bytes()
# Bigger token tiles on 128 MiB parts (v5e/v6e), smaller on v7x.
_TM_TARGET = 1024 if _VMEM_BYTES >= (100 << 20) else 512
_VMEM_LIMIT = min(int(_VMEM_BYTES * 3 // 4), 96 << 20)


def _round_up(x, m):
    return ((x + m - 1) // m) * m


def _choose_tm(n_rows):
    # Token tile: multiple of 8 (sublane), capped by generation-specific target.
    return min(_TM_TARGET, _round_up(n_rows, 8))


def _pad_rows(x2d, tm):
    t = x2d.shape[0]
    tp = _round_up(t, tm)
    if tp != t:
        x2d = jnp.pad(x2d, ((0, tp - t), (0, 0)))
    return x2d


# ---------------------------------------------------------------------------
# 1. Token-tiled matmul (no bias) -- used for fused QKV projection and out_proj.
# ---------------------------------------------------------------------------
def _linear_kernel(x_ref, w_ref, o_ref):
    o_ref[...] = jnp.dot(
        x_ref[...], w_ref[...], preferred_element_type=jnp.float32
    ).astype(o_ref.dtype)


def linear_no_bias(x2d, w, *, tm=None):
    """x2d: (T, din); w: (din, dout) [nn.Linear weight stored transposed] -> (T, dout)."""
    t, din = x2d.shape
    dout = w.shape[1]
    tm = _choose_tm(t) if tm is None else tm
    xp = _pad_rows(x2d, tm)
    tp = xp.shape[0]
    out = pl.pallas_call(
        _linear_kernel,
        out_shape=jax.ShapeDtypeStruct((tp, dout), x2d.dtype),
        grid_spec=pltpu.PrefetchScalarGridSpec(
            num_scalar_prefetch=0,
            grid=(tp // tm,),
            in_specs=[
                pl.BlockSpec((tm, din), lambda i: (i, 0)),      # pipelined x tile
                pl.BlockSpec((din, dout), lambda i: (0, 0)),    # resident weights
            ],
            out_specs=pl.BlockSpec((tm, dout), lambda i: (i, 0)),
        ),
        compiler_params=pltpu.CompilerParams(
            dimension_semantics=("parallel",),
            vmem_limit_bytes=_VMEM_LIMIT,
        ),
        cost_estimate=pl.CostEstimate(
            flops=int(2 * tp * din * dout),
            transcendentals=0,
            bytes_accessed=int((tp * din + din * dout + tp * dout) * x2d.dtype.itemsize),
        ),
    )(xp, w)
    return out[:t]


# ---------------------------------------------------------------------------
# 2. Attention core: softmax(q k^T / sqrt(d)) v, one (batch, head) per grid step.
#    (For long sequences this would become an online-softmax/flash kernel; here
#    the full (L, L) score tile fits trivially in VMEM.)
# ---------------------------------------------------------------------------
def _attn_core_kernel(q_ref, k_ref, v_ref, o_ref, *, scale):
    q = q_ref[0, 0].astype(jnp.float32)
    k = k_ref[0, 0].astype(jnp.float32)
    v = v_ref[0, 0]
    s = jax.lax.dot_general(
        q, k, (((1,), (1,)), ((), ())), preferred_element_type=jnp.float32
    ) * scale
    s = s - jnp.max(s, axis=-1, keepdims=True)
    p = jnp.exp(s)
    p = p / jnp.sum(p, axis=-1, keepdims=True)
    # attn_drop: eval-mode identity.  TODO(synk): training-mode dropout mask.
    o = jnp.dot(p.astype(v.dtype), v, preferred_element_type=jnp.float32)
    o_ref[0, 0] = o.astype(o_ref.dtype)


def attention_core(q, k, v):
    """q, k, v: (B, H, L, Dh) -> (B, H, L, Dh)."""
    b, h, l, dh = q.shape
    scale = 1.0 / math.sqrt(dh)
    spec = pl.BlockSpec((1, 1, l, dh), lambda bi, hi: (bi, hi, 0, 0))
    return pl.pallas_call(
        functools.partial(_attn_core_kernel, scale=scale),
        out_shape=jax.ShapeDtypeStruct((b, h, l, dh), q.dtype),
        grid_spec=pltpu.PrefetchScalarGridSpec(
            num_scalar_prefetch=0,
            grid=(b, h),
            in_specs=[spec, spec, spec],
            out_specs=spec,
        ),
        compiler_params=pltpu.CompilerParams(
            dimension_semantics=("parallel", "parallel"),
            vmem_limit_bytes=_VMEM_LIMIT,
        ),
    )(q, k, v)


# ---------------------------------------------------------------------------
# 3. Residual add + LayerNorm (PyTorch: x += sublayer(x); x = LayerNorm(x)).
# ---------------------------------------------------------------------------
def _add_ln_kernel(x_ref, y_ref, g_ref, b_ref, o_ref, *, eps):
    z = x_ref[...].astype(jnp.float32) + y_ref[...].astype(jnp.float32)
    mean = jnp.mean(z, axis=-1, keepdims=True)
    zc = z - mean
    var = jnp.mean(zc * zc, axis=-1, keepdims=True)
    inv = jax.lax.rsqrt(var + eps)
    # resid_drop: eval-mode identity.  TODO(synk): training-mode dropout mask.
    o_ref[...] = (zc * inv * g_ref[...] + b_ref[...]).astype(o_ref.dtype)


def add_layer_norm(x2d, y2d, gamma, beta, *, eps=1e-5, tm=None):
    t, d = x2d.shape
    tm = _choose_tm(t) if tm is None else tm
    xp = _pad_rows(x2d, tm)
    yp = _pad_rows(y2d, tm)
    tp = xp.shape[0]
    out = pl.pallas_call(
        functools.partial(_add_ln_kernel, eps=eps),
        out_shape=jax.ShapeDtypeStruct((tp, d), x2d.dtype),
        grid_spec=pltpu.PrefetchScalarGridSpec(
            num_scalar_prefetch=0,
            grid=(tp // tm,),
            in_specs=[
                pl.BlockSpec((tm, d), lambda i: (i, 0)),
                pl.BlockSpec((tm, d), lambda i: (i, 0)),
                pl.BlockSpec((1, d), lambda i: (0, 0)),
                pl.BlockSpec((1, d), lambda i: (0, 0)),
            ],
            out_specs=pl.BlockSpec((tm, d), lambda i: (i, 0)),
        ),
        compiler_params=pltpu.CompilerParams(
            dimension_semantics=("parallel",),
            vmem_limit_bytes=_VMEM_LIMIT,
        ),
    )(xp, yp, gamma.reshape(1, d), beta.reshape(1, d))
    return out[:t]


# ---------------------------------------------------------------------------
# 4. Positionwise feed-forward: Linear -> ReLU/GELU -> Linear (fused, token-tiled).
# ---------------------------------------------------------------------------
def _ffn_kernel(x_ref, w1_ref, b1_ref, w2_ref, b2_ref, o_ref, *, activ):
    h = jnp.dot(x_ref[...], w1_ref[...], preferred_element_type=jnp.float32)
    h = h + b1_ref[...]
    if activ == "relu":
        h = jnp.maximum(h, 0.0)
    else:  # exact erf-GELU matches torch.nn.GELU() default
        h = jax.nn.gelu(h, approximate=False)
    y = jnp.dot(h.astype(w2_ref.dtype), w2_ref[...],
                preferred_element_type=jnp.float32) + b2_ref[...]
    # mlp_drop: eval-mode identity.  TODO(synk): training-mode dropout mask.
    o_ref[...] = y.astype(o_ref.dtype)


def feed_forward(x2d, w1, b1, w2, b2, *, activ="relu", tm=None):
    t, d = x2d.shape
    md = w1.shape[1]
    tm = _choose_tm(t) if tm is None else tm
    xp = _pad_rows(x2d, tm)
    tp = xp.shape[0]
    out = pl.pallas_call(
        functools.partial(_ffn_kernel, activ=activ),
        out_shape=jax.ShapeDtypeStruct((tp, d), x2d.dtype),
        grid_spec=pltpu.PrefetchScalarGridSpec(
            num_scalar_prefetch=0,
            grid=(tp // tm,),
            in_specs=[
                pl.BlockSpec((tm, d), lambda i: (i, 0)),       # pipelined x tile
                pl.BlockSpec((d, md), lambda i: (0, 0)),       # resident W1
                pl.BlockSpec((1, md), lambda i: (0, 0)),
                pl.BlockSpec((md, d), lambda i: (0, 0)),       # resident W2
                pl.BlockSpec((1, d), lambda i: (0, 0)),
            ],
            out_specs=pl.BlockSpec((tm, d), lambda i: (i, 0)),
        ),
        compiler_params=pltpu.CompilerParams(
            dimension_semantics=("parallel",),
            vmem_limit_bytes=_VMEM_LIMIT,
        ),
        cost_estimate=pl.CostEstimate(
            flops=int(4 * tp * d * md),
            transcendentals=0 if activ == "relu" else int(tp * md),
            bytes_accessed=int((2 * tp * d + 2 * d * md + md + d) * x2d.dtype.itemsize),
        ),
    )(xp, w1, b1.reshape(1, md), w2, b2.reshape(1, d))
    return out[:t]


# ---------------------------------------------------------------------------
# Full EncoderLayer forward (eval mode).
# ---------------------------------------------------------------------------
def encoder_layer(x, params, *, n_heads, mask=None):
    """x: (B, L, dim).  All nn.Linear weights are stored transposed as (in, out)."""
    assert mask is None  # TODO(synk): boolean attention mask (masked_fill -1e9)
    b, l, dim = x.shape
    head_dim = dim // n_heads
    t = b * l
    x2d = x.reshape(t, dim)

    # --- Multi-head self-attention ---
    # Fused q/k/v projection: one token-tiled matmul vs. the concatenated weight.
    w_qkv = jnp.concatenate([params["wq"], params["wk"], params["wv"]], axis=1)
    qkv = linear_no_bias(x2d, w_qkv)                       # (T, 3*dim)
    q, k, v = jnp.split(qkv, 3, axis=1)
    # NOTE: the reference module uses .view(b, n_heads, l, head_dim) -- a straight
    # row-major reshape (NOT a (b, l, h, d) transpose); replicate that exactly.
    q = q.reshape(b, n_heads, l, head_dim)
    k = k.reshape(b, n_heads, l, head_dim)
    v = v.reshape(b, n_heads, l, head_dim)
    attn = attention_core(q, k, v)                         # (B, H, L, Dh)
    # rearrange 'b n i d -> b i (n d)'  (layout plumbing in the wrapper)
    attn = attn.transpose(0, 2, 1, 3).reshape(t, dim)
    attn_out = linear_no_bias(attn, params["wo"])          # out_proj (no bias)

    # Residual + LayerNorm #1
    h2d = add_layer_norm(x2d, attn_out, params["ln1_g"], params["ln1_b"])

    # --- Positionwise feed-forward (EncoderLayer hard-codes ReLU) ---
    ff = feed_forward(h2d, params["w1"], params["b1"], params["w2"], params["b2"],
                      activ="relu")

    # Residual + LayerNorm #2
    out2d = add_layer_norm(h2d, ff, params["ln2_g"], params["ln2_b"])
    return out2d.reshape(b, l, dim)


# ---------------------------------------------------------------------------
# Pure-JAX reference (mirrors the PyTorch forward, eval mode).
# ---------------------------------------------------------------------------
def reference_encoder_layer(x, params, *, n_heads, eps=1e-5):
    b, l, dim = x.shape
    hd = dim // n_heads

    def ln(z, g, bta):
        m = jnp.mean(z, axis=-1, keepdims=True)
        v = jnp.mean((z - m) ** 2, axis=-1, keepdims=True)
        return (z - m) / jnp.sqrt(v + eps) * g + bta

    q = (x @ params["wq"]).reshape(b, n_heads, l, hd)
    k = (x @ params["wk"]).reshape(b, n_heads, l, hd)
    v = (x @ params["wv"]).reshape(b, n_heads, l, hd)
    s = jnp.einsum("bnid,bnjd->bnij", q, k) / (hd ** 0.5)
    w = jax.nn.softmax(s, axis=3)
    a = jnp.einsum("bnij,bnjd->bnid", w, v)
    a = a.transpose(0, 2, 1, 3).reshape(b, l, dim)
    a = a @ params["wo"]
    h = ln(x + a, params["ln1_g"], params["ln1_b"])
    f = jnp.maximum(h @ params["w1"] + params["b1"], 0.0) @ params["w2"] + params["b2"]
    return ln(h + f, params["ln2_g"], params["ln2_b"])


if __name__ == "__main__":
    # Small but lane-friendly shapes: dim is a multiple of 128 so stores are
    # unmasked full-lane vst's.
    B, L, DIM, N_HEADS, MLP_DIM = 2, 16, 128, 4, 256

    key = jax.random.PRNGKey(0)
    ks = jax.random.split(key, 12)
    sd, sm = DIM ** -0.5, MLP_DIM ** -0.5

    x = jax.random.normal(ks[0], (B, L, DIM), dtype=jnp.float32)
    params = {
        "wq": jax.random.normal(ks[1], (DIM, DIM), jnp.float32) * sd,
        "wk": jax.random.normal(ks[2], (DIM, DIM), jnp.float32) * sd,
        "wv": jax.random.normal(ks[3], (DIM, DIM), jnp.float32) * sd,
        "wo": jax.random.normal(ks[4], (DIM, DIM), jnp.float32) * sd,
        "ln1_g": 1.0 + 0.1 * jax.random.normal(ks[5], (DIM,), jnp.float32),
        "ln1_b": 0.1 * jax.random.normal(ks[6], (DIM,), jnp.float32),
        "w1": jax.random.normal(ks[7], (DIM, MLP_DIM), jnp.float32) * sd,
        "b1": 0.1 * jax.random.normal(ks[8], (MLP_DIM,), jnp.float32),
        "w2": jax.random.normal(ks[9], (MLP_DIM, DIM), jnp.float32) * sm,
        "b2": 0.1 * jax.random.normal(ks[10], (DIM,), jnp.float32),
        "ln2_g": 1.0 + 0.1 * jax.random.normal(ks[11], (DIM,), jnp.float32),
        "ln2_b": jnp.zeros((DIM,), jnp.float32),
    }

    fwd = jax.jit(lambda xx, pp: encoder_layer(xx, pp, n_heads=N_HEADS))
    out = fwd(x, params)
    jax.block_until_ready(out)

    ref = reference_encoder_layer(x, params, n_heads=N_HEADS)
    assert out.shape == (B, L, DIM)
    assert jnp.allclose(out, ref, atol=1e-4, rtol=1e-4), (
        float(jnp.max(jnp.abs(out - ref))))

    print("KERNEL_OK")
</pallas_src>

<mosaic_0001>
module attributes {stable_mosaic.version = 11 : i64} {
  func.func @_linear_kernel(%arg0: i32, %arg1: memref<32x128xf32, #tpu.memory_space<vmem>>, %arg2: memref<128x384xf32, #tpu.memory_space<vmem>>, %arg3: memref<32x384xf32, #tpu.memory_space<vmem>>) attributes {dimension_semantics = [#tpu.dimension_semantics<parallel>], iteration_bounds = array<i64: 1>, scalar_prefetch = 0 : i64, scratch_operands = 0 : i64, tpu.core_type = #tpu.core_type<tc>, window_params = [{transform_indices = @transform_0, window_bounds = array<i64: 32, 128>}, {pipeline_mode = #tpu.pipeline_mode<synchronous>, transform_indices = @transform_1, window_bounds = array<i64: 128, 384>}, {transform_indices = @transform_2, window_bounds = array<i64: 32, 384>}]} {
    %c0 = arith.constant 0 : index
    %c0_0 = arith.constant 0 : index
    %0 = vector.load %arg1[%c0, %c0_0] : memref<32x128xf32, #tpu.memory_space<vmem>>, vector<32x128xf32>
    %c0_1 = arith.constant 0 : index
    %c0_2 = arith.constant 0 : index
    %1 = vector.load %arg2[%c0_1, %c0_2] : memref<128x384xf32, #tpu.memory_space<vmem>>, vector<128x384xf32>
    %cst = arith.constant dense<0.000000e+00> : vector<32x384xf32>
    %2 = tpu.matmul %0, %1, %cst {dimension_numbers = #tpu.dot_dimension_numbers<[1], [0], [0], [1], [0, 0, 1, 1], [], []>} : vector<32x128xf32>, vector<128x384xf32>, vector<32x384xf32> -> vector<32x384xf32>
    %c0_3 = arith.constant 0 : index
    %c0_4 = arith.constant 0 : index
    %3 = vector.load %arg3[%c0_3, %c0_4] : memref<32x384xf32, #tpu.memory_space<vmem>>, vector<32x384xf32>
    tpu.vector_store %arg3[%c0_3, %c0_4], %2 {strides = array<i32>} : memref<32x384xf32, #tpu.memory_space<vmem>>, vector<32x384xf32>,
    return
  }
  func.func @transform_0(%arg0: i32) -> (i32, i32) {
    %c0_i32 = arith.constant 0 : i32
    %c0_i32_0 = arith.constant 0 : i32
    return %arg0, %c0_i32 : i32, i32
  }
  func.func @transform_1(%arg0: i32) -> (i32, i32) {
    %c0_i32 = arith.constant 0 : i32
    %c0_i32_0 = arith.constant 0 : i32
    %c0_i32_1 = arith.constant 0 : i32
    return %c0_i32, %c0_i32_0 : i32, i32
  }
  func.func @transform_2(%arg0: i32) -> (i32, i32) {
    %c0_i32 = arith.constant 0 : i32
    %c0_i32_0 = arith.constant 0 : i32
    return %arg0, %c0_i32 : i32, i32
  }
}

module attributes {stable_mosaic.version = 11 : i64} {
  func.func @_attn_core_kernel(%arg0: i32, %arg1: i32, %arg2: memref<1x1x16x32xf32, #tpu.memory_space<vmem>>, %arg3: memref<1x1x16x32xf32, #tpu.memory_space<vmem>>, %arg4: memref<1x1x16x32xf32, #tpu.memory_space<vmem>>, %arg5: memref<1x1x16x32xf32, #tpu.memory_space<vmem>>) attributes {dimension_semantics = [#tpu.dimension_semantics<parallel>, #tpu.dimension_semantics<parallel>], iteration_bounds = array<i64: 2, 4>, scalar_prefetch = 0 : i64, scratch_operands = 0 : i64, tpu.core_type = #tpu.core_type<tc>, window_params = [{transform_indices = @transform_0, window_bounds = array<i64: 1, 1, 16, 32>}, {transform_indices = @transform_1, window_bounds = array<i64: 1, 1, 16, 32>}, {transform_indices = @transform_2, window_bounds = array<i64: 1, 1, 16, 32>}, {transform_indices = @transform_3, window_bounds = array<i64: 1, 1, 16, 32>}]} {
    %c0 = arith.constant 0 : index
    %c0_0 = arith.constant 0 : index
    %c0_1 = arith.constant 0 : index
    %c0_2 = arith.constant 0 : index
    %0 = vector.load %arg2[%c0, %c0_0, %c0_1, %c0_2] : memref<1x1x16x32xf32, #tpu.memory_space<vmem>>, vector<1x1x16x32xf32>
    %1 = vector.shape_cast %0 : vector<1x1x16x32xf32> to vector<16x32xf32>
    %c0_3 = arith.constant 0 : index
    %c0_4 = arith.constant 0 : index
    %c0_5 = arith.constant 0 : index
    %c0_6 = arith.constant 0 : index
    %2 = vector.load %arg3[%c0_3, %c0_4, %c0_5, %c0_6] : memref<1x1x16x32xf32, #tpu.memory_space<vmem>>, vector<1x1x16x32xf32>
    %3 = vector.shape_cast %2 : vector<1x1x16x32xf32> to vector<16x32xf32>
    %c0_7 = arith.constant 0 : index
    %c0_8 = arith.constant 0 : index
    %c0_9 = arith.constant 0 : index
    %c0_10 = arith.constant 0 : index
    %4 = vector.load %arg4[%c0_7, %c0_8, %c0_9, %c0_10] : memref<1x1x16x32xf32, #tpu.memory_space<vmem>>, vector<1x1x16x32xf32>
    %5 = vector.shape_cast %4 : vector<1x1x16x32xf32> to vector<16x32xf32>
    %cst = arith.constant dense<0.000000e+00> : vector<16x16xf32>
    %6 = tpu.matmul %1, %3, %cst {dimension_numbers = #tpu.dot_dimension_numbers<[1], [1], [0], [0], [0, 0, 1, 0], [], []>} : vector<16x32xf32>, vector<16x32xf32>, vector<16x16xf32> -> vector<16x16xf32>
    %cst_11 = arith.constant 0.176776692 : f32
    %7 = vector.broadcast %cst_11 : f32 to vector<16x16xf32>
    %8 = arith.mulf %6, %7 : vector<16x16xf32>
    %cst_12 = arith.constant dense<0xFF800000> : vector<16xf32>
    %9 = vector.multi_reduction <maximumf>, %8, %cst_12 [1] : vector<16x16xf32> to vector<16xf32>
    %10 = vector.shape_cast %9 : vector<16xf32> to vector<16x1xf32>
    %11 = vector.broadcast %10 : vector<16x1xf32> to vector<16x16xf32>
    %12 = arith.subf %8, %11 : vector<16x16xf32>
    %13 = math.exp %12 : vector<16x16xf32>
    %cst_13 = arith.constant dense<0.000000e+00> : vector<16xf32>
    %14 = vector.multi_reduction <add>, %13, %cst_13 [1] : vector<16x16xf32> to vector<16xf32>
    %15 = vector.shape_cast %14 : vector<16xf32> to vector<16x1xf32>
    %16 = vector.broadcast %15 : vector<16x1xf32> to vector<16x16xf32>
    %17 = arith.divf %13, %16 : vector<16x16xf32>
    %cst_14 = arith.constant dense<0.000000e+00> : vector<16x32xf32>
    %18 = tpu.matmul %17, %5, %cst_14 {dimension_numbers = #tpu.dot_dimension_numbers<[1], [0], [0], [1], [0, 0, 1, 1], [], []>} : vector<16x16xf32>, vector<16x32xf32>, vector<16x32xf32> -> vector<16x32xf32>
    %c0_15 = arith.constant 0 : index
    %c0_16 = arith.constant 0 : index
    %c0_17 = arith.constant 0 : index
    %c0_18 = arith.constant 0 : index
    %19 = vector.load %arg5[%c0_15, %c0_16, %c0_17, %c0_18] : memref<1x1x16x32xf32, #tpu.memory_space<vmem>>, vector<1x1x16x32xf32>
    %20 = vector.shape_cast %19 : vector<1x1x16x32xf32> to vector<16x32xf32>
    %21 = vector.shape_cast %18 : vector<16x32xf32> to vector<1x1x16x32xf32>
    tpu.vector_store %arg5[%c0_15, %c0_16, %c0_17, %c0_18], %21 {strides = array<i32>} : memref<1x1x16x32xf32, #tpu.memory_space<vmem>>, vector<1x1x16x32xf32>,
    return
  }
  func.func @transform_0(%arg0: i32, %arg1: i32) -> (i32, i32, i32, i32) {
    %c0_i32 = arith.constant 0 : i32
    %c0_i32_0 = arith.constant 0 : i32
    %c0_i32_1 = arith.constant 0 : i32
    return %arg0, %arg1, %c0_i32, %c0_i32_0 : i32, i32, i32, i32
  }
  func.func @transform_1(%arg0: i32, %arg1: i32) -> (i32, i32, i32, i32) {
    %c0_i32 = arith.constant 0 : i32
    %c0_i32_0 = arith.constant 0 : i32
    %c0_i32_1 = arith.constant 0 : i32
    return %arg0, %arg1, %c0_i32, %c0_i32_0 : i32, i32, i32, i32
  }
  func.func @transform_2(%arg0: i32, %arg1: i32) -> (i32, i32, i32, i32) {
    %c0_i32 = arith.constant 0 : i32
    %c0_i32_0 = arith.constant 0 : i32
    %c0_i32_1 = arith.constant 0 : i32
    return %arg0, %arg1, %c0_i32, %c0_i32_0 : i32, i32, i32, i32
  }
  func.func @transform_3(%arg0: i32, %arg1: i32) -> (i32, i32, i32, i32) {
    %c0_i32 = arith.constant 0 : i32
    %c0_i32_0 = arith.constant 0 : i32
    %c0_i32_1 = arith.constant 0 : i32
    return %arg0, %arg1, %c0_i32, %c0_i32_0 : i32, i32, i32, i32
  }
}

module attributes {stable_mosaic.version = 11 : i64} {
  func.func @_linear_kernel(%arg0: i32, %arg1: memref<32x128xf32, #tpu.memory_space<vmem>>, %arg2: memref<128x128xf32, #tpu.memory_space<vmem>>, %arg3: memref<32x128xf32, #tpu.memory_space<vmem>>) attributes {dimension_semantics = [#tpu.dimension_semantics<parallel>], iteration_bounds = array<i64: 1>, scalar_prefetch = 0 : i64, scratch_operands = 0 : i64, tpu.core_type = #tpu.core_type<tc>, window_params = [{transform_indices = @transform_0, window_bounds = array<i64: 32, 128>}, {pipeline_mode = #tpu.pipeline_mode<synchronous>, transform_indices = @transform_1, window_bounds = array<i64: 128, 128>}, {transform_indices = @transform_2, window_bounds = array<i64: 32, 128>}]} {
    %c0 = arith.constant 0 : index
    %c0_0 = arith.constant 0 : index
    %0 = vector.load %arg1[%c0, %c0_0] : memref<32x128xf32, #tpu.memory_space<vmem>>, vector<32x128xf32>
    %c0_1 = arith.constant 0 : index
    %c0_2 = arith.constant 0 : index
    %1 = vector.load %arg2[%c0_1, %c0_2] : memref<128x128xf32, #tpu.memory_space<vmem>>, vector<128x128xf32>
    %cst = arith.constant dense<0.000000e+00> : vector<32x128xf32>
    %2 = tpu.matmul %0, %1, %cst {dimension_numbers = #tpu.dot_dimension_numbers<[1], [0], [0], [1], [0, 0, 1, 1], [], []>} : vector<32x128xf32>, vector<128x128xf32>, vector<32x128xf32> -> vector<32x128xf32>
    %c0_3 = arith.constant 0 : index
    %c0_4 = arith.constant 0 : index
    %3 = vector.load %arg3[%c0_3, %c0_4] : memref<32x128xf32, #tpu.memory_space<vmem>>, vector<32x128xf32>
    tpu.vector_store %arg3[%c0_3, %c0_4], %2 {strides = array<i32>} : memref<32x128xf32, #tpu.memory_space<vmem>>, vector<32x128xf32>,
    return
  }
  func.func @transform_0(%arg0: i32) -> (i32, i32) {
    %c0_i32 = arith.constant 0 : i32
    %c0_i32_0 = arith.constant 0 : i32
    return %arg0, %c0_i32 : i32, i32
  }
  func.func @transform_1(%arg0: i32) -> (i32, i32) {
    %c0_i32 = arith.constant 0 : i32
    %c0_i32_0 = arith.constant 0 : i32
    %c0_i32_1 = arith.constant 0 : i32
    return %c0_i32, %c0_i32_0 : i32, i32
  }
  func.func @transform_2(%arg0: i32) -> (i32, i32) {
    %c0_i32 = arith.constant 0 : i32
    %c0_i32_0 = arith.constant 0 : i32
    return %arg0, %c0_i32 : i32, i32
  }
}

module attributes {stable_mosaic.version = 11 : i64} {
  func.func @_add_ln_kernel(%arg0: i32, %arg1: memref<32x128xf32, #tpu.memory_space<vmem>>, %arg2: memref<32x128xf32, #tpu.memory_space<vmem>>, %arg3: memref<1x128xf32, #tpu.memory_space<vmem>>, %arg4: memref<1x128xf32, #tpu.memory_space<vmem>>, %arg5: memref<32x128xf32, #tpu.memory_space<vmem>>) attributes {dimension_semantics = [#tpu.dimension_semantics<parallel>], iteration_bounds = array<i64: 1>, scalar_prefetch = 0 : i64, scratch_operands = 0 : i64, tpu.core_type = #tpu.core_type<tc>, window_params = [{transform_indices = @transform_0, window_bounds = array<i64: 32, 128>}, {transform_indices = @transform_1, window_bounds = array<i64: 32, 128>}, {pipeline_mode = #tpu.pipeline_mode<synchronous>, transform_indices = @transform_2, window_bounds = array<i64: 1, 128>}, {pipeline_mode = #tpu.pipeline_mode<synchronous>, transform_indices = @transform_3, window_bounds = array<i64: 1, 128>}, {transform_indices = @transform_4, window_bounds = array<i64: 32, 128>}]} {
    %c0 = arith.constant 0 : index
    %c0_0 = arith.constant 0 : index
    %0 = vector.load %arg1[%c0, %c0_0] : memref<32x128xf32, #tpu.memory_space<vmem>>, vector<32x128xf32>
    %c0_1 = arith.constant 0 : index
    %c0_2 = arith.constant 0 : index
    %1 = vector.load %arg2[%c0_1, %c0_2] : memref<32x128xf32, #tpu.memory_space<vmem>>, vector<32x128xf32>
    %2 = arith.addf %0, %1 : vector<32x128xf32>
    %cst = arith.constant dense<0.000000e+00> : vector<32xf32>
    %3 = vector.multi_reduction <add>, %2, %cst [1] : vector<32x128xf32> to vector<32xf32>
    %4 = vector.shape_cast %3 : vector<32xf32> to vector<32x1xf32>
    %cst_3 = arith.constant 1.280000e+02 : f32
    %5 = vector.broadcast %cst_3 : f32 to vector<32x1xf32>
    %6 = arith.divf %4, %5 : vector<32x1xf32>
    %7 = vector.broadcast %6 : vector<32x1xf32> to vector<32x128xf32>
    %8 = arith.subf %2, %7 : vector<32x128xf32>
    %9 = arith.mulf %8, %8 : vector<32x128xf32>
    %cst_4 = arith.constant dense<0.000000e+00> : vector<32xf32>
    %10 = vector.multi_reduction <add>, %9, %cst_4 [1] : vector<32x128xf32> to vector<32xf32>
    %11 = vector.shape_cast %10 : vector<32xf32> to vector<32x1xf32>
    %cst_5 = arith.constant 1.280000e+02 : f32
    %12 = vector.broadcast %cst_5 : f32 to vector<32x1xf32>
    %13 = arith.divf %11, %12 : vector<32x1xf32>
    %cst_6 = arith.constant 9.99999974E-6 : f32
    %14 = vector.broadcast %cst_6 : f32 to vector<32x1xf32>
    %15 = arith.addf %13, %14 : vector<32x1xf32>
    %16 = math.rsqrt %15 : vector<32x1xf32>
    %17 = vector.broadcast %16 : vector<32x1xf32> to vector<32x128xf32>
    %18 = arith.mulf %8, %17 : vector<32x128xf32>
    %c0_7 = arith.constant 0 : index
    %c0_8 = arith.constant 0 : index
    %19 = vector.load %arg3[%c0_7, %c0_8] : memref<1x128xf32, #tpu.memory_space<vmem>>, vector<1x128xf32>
    %20 = vector.broadcast %19 : vector<1x128xf32> to vector<32x128xf32>
    %21 = arith.mulf %18, %20 : vector<32x128xf32>
    %c0_9 = arith.constant 0 : index
    %c0_10 = arith.constant 0 : index
    %22 = vector.load %arg4[%c0_9, %c0_10] : memref<1x128xf32, #tpu.memory_space<vmem>>, vector<1x128xf32>
    %23 = vector.broadcast %22 : vector<1x128xf32> to vector<32x128xf32>
    %24 = arith.addf %21, %23 : vector<32x128xf32>
    %c0_11 = arith.constant 0 : index
    %c0_12 = arith.constant 0 : index
    %25 = vector.load %arg5[%c0_11, %c0_12] : memref<32x128xf32, #tpu.memory_space<vmem>>, vector<32x128xf32>
    tpu.vector_store %arg5[%c0_11, %c0_12], %24 {strides = array<i32>} : memref<32x128xf32, #tpu.memory_space<vmem>>, vector<32x128xf32>,
    return
  }
  func.func @transform_0(%arg0: i32) -> (i32, i32) {
    %c0_i32 = arith.constant 0 : i32
    %c0_i32_0 = arith.constant 0 : i32
    return %arg0, %c0_i32 : i32, i32
  }
  func.func @transform_1(%arg0: i32) -> (i32, i32) {
    %c0_i32 = arith.constant 0 : i32
    %c0_i32_0 = arith.constant 0 : i32
    return %arg0, %c0_i32 : i32, i32
  }
  func.func @transform_2(%arg0: i32) -> (i32, i32) {
    %c0_i32 = arith.constant 0 : i32
    %c0_i32_0 = arith.constant 0 : i32
    %c0_i32_1 = arith.constant 0 : i32
    return %c0_i32, %c0_i32_0 : i32, i32
  }
  func.func @transform_3(%arg0: i32) -> (i32, i32) {
    %c0_i32 = arith.constant 0 : i32
    %c0_i32_0 = arith.constant 0 : i32
    %c0_i32_1 = arith.constant 0 : i32
    return %c0_i32, %c0_i32_0 : i32, i32
  }
  func.func @transform_4(%arg0: i32) -> (i32, i32) {
    %c0_i32 = arith.constant 0 : i32
    %c0_i32_0 = arith.constant 0 : i32
    return %arg0, %c0_i32 : i32, i32
  }
}

module attributes {stable_mosaic.version = 11 : i64} {
  func.func @_add_ln_kernel(%arg0: i32, %arg1: memref<32x128xf32, #tpu.memory_space<vmem>>, %arg2: memref<32x128xf32, #tpu.memory_space<vmem>>, %arg3: memref<1x128xf32, #tpu.memory_space<vmem>>, %arg4: memref<1x128xf32, #tpu.memory_space<vmem>>, %arg5: memref<32x128xf32, #tpu.memory_space<vmem>>) attributes {dimension_semantics = [#tpu.dimension_semantics<parallel>], iteration_bounds = array<i64: 1>, scalar_prefetch = 0 : i64, scratch_operands = 0 : i64, tpu.core_type = #tpu.core_type<tc>, window_params = [{transform_indices = @transform_0, window_bounds = array<i64: 32, 128>}, {transform_indices = @transform_1, window_bounds = array<i64: 32, 128>}, {pipeline_mode = #tpu.pipeline_mode<synchronous>, transform_indices = @transform_2, window_bounds = array<i64: 1, 128>}, {pipeline_mode = #tpu.pipeline_mode<synchronous>, transform_indices = @transform_3, window_bounds = array<i64: 1, 128>}, {transform_indices = @transform_4, window_bounds = array<i64: 32, 128>}]} {
    %c0 = arith.constant 0 : index
    %c0_0 = arith.constant 0 : index
    %0 = vector.load %arg1[%c0, %c0_0] : memref<32x128xf32, #tpu.memory_space<vmem>>, vector<32x128xf32>
    %c0_1 = arith.constant 0 : index
    %c0_2 = arith.constant 0 : index
    %1 = vector.load %arg2[%c0_1, %c0_2] : memref<32x128xf32, #tpu.memory_space<vmem>>, vector<32x128xf32>
    %2 = arith.addf %0, %1 : vector<32x128xf32>
    %cst = arith.constant dense<0.000000e+00> : vector<32xf32>
    %3 = vector.multi_reduction <add>, %2, %cst [1] : vector<32x128xf32> to vector<32xf32>
    %4 = vector.shape_cast %3 : vector<32xf32> to vector<32x1xf32>
    %cst_3 = arith.constant 1.280000e+02 : f32
    %5 = vector.broadcast %cst_3 : f32 to vector<32x1xf32>
    %6 = arith.divf %4, %5 : vector<32x1xf32>
    %7 = vector.broadcast %6 : vector<32x1xf32> to vector<32x128xf32>
    %8 = arith.subf %2, %7 : vector<32x128xf32>
    %9 = arith.mulf %8, %8 : vector<32x128xf32>
    %cst_4 = arith.constant dense<0.000000e+00> : vector<32xf32>
    %10 = vector.multi_reduction <add>, %9, %cst_4 [1] : vector<32x128xf32> to vector<32xf32>
    %11 = vector.shape_cast %10 : vector<32xf32> to vector<32x1xf32>
    %cst_5 = arith.constant 1.280000e+02 : f32
    %12 = vector.broadcast %cst_5 : f32 to vector<32x1xf32>
    %13 = arith.divf %11, %12 : vector<32x1xf32>
    %cst_6 = arith.constant 9.99999974E-6 : f32
    %14 = vector.broadcast %cst_6 : f32 to vector<32x1xf32>
    %15 = arith.addf %13, %14 : vector<32x1xf32>
    %16 = math.rsqrt %15 : vector<32x1xf32>
    %17 = vector.broadcast %16 : vector<32x1xf32> to vector<32x128xf32>
    %18 = arith.mulf %8, %17 : vector<32x128xf32>
    %c0_7 = arith.constant 0 : index
    %c0_8 = arith.constant 0 : index
    %19 = vector.load %arg3[%c0_7, %c0_8] : memref<1x128xf32, #tpu.memory_space<vmem>>, vector<1x128xf32>
    %20 = vector.broadcast %19 : vector<1x128xf32> to vector<32x128xf32>
    %21 = arith.mulf %18, %20 : vector<32x128xf32>
    %c0_9 = arith.constant 0 : index
    %c0_10 = arith.constant 0 : index
    %22 = vector.load %arg4[%c0_9, %c0_10] : memref<1x128xf32, #tpu.memory_space<vmem>>, vector<1x128xf32>
    %23 = vector.broadcast %22 : vector<1x128xf32> to vector<32x128xf32>
    %24 = arith.addf %21, %23 : vector<32x128xf32>
    %c0_11 = arith.constant 0 : index
    %c0_12 = arith.constant 0 : index
    %25 = vector.load %arg5[%c0_11, %c0_12] : memref<32x128xf32, #tpu.memory_space<vmem>>, vector<32x128xf32>
    tpu.vector_store %arg5[%c0_11, %c0_12], %24 {strides = array<i32>} : memref<32x128xf32, #tpu.memory_space<vmem>>, vector<32x128xf32>,
    return
  }
  func.func @transform_0(%arg0: i32) -> (i32, i32) {
    %c0_i32 = arith.constant 0 : i32
    %c0_i32_0 = arith.constant 0 : i32
    return %arg0, %c0_i32 : i32, i32
  }
  func.func @transform_1(%arg0: i32) -> (i32, i32) {
    %c0_i32 = arith.constant 0 : i32
    %c0_i32_0 = arith.constant 0 : i32
    return %arg0, %c0_i32 : i32, i32
  }
  func.func @transform_2(%arg0: i32) -> (i32, i32) {
    %c0_i32 = arith.constant 0 : i32
    %c0_i32_0 = arith.constant 0 : i32
    %c0_i32_1 = arith.constant 0 : i32
    return %c0_i32, %c0_i32_0 : i32, i32
  }
  func.func @transform_3(%arg0: i32) -> (i32, i32) {
    %c0_i32 = arith.constant 0 : i32
    %c0_i32_0 = arith.constant 0 : i32
    %c0_i32_1 = arith.constant 0 : i32
    return %c0_i32, %c0_i32_0 : i32, i32
  }
  func.func @transform_4(%arg0: i32) -> (i32, i32) {
    %c0_i32 = arith.constant 0 : i32
    %c0_i32_0 = arith.constant 0 : i32
    return %arg0, %c0_i32 : i32, i32
  }
}

module attributes {stable_mosaic.version = 11 : i64} {
  func.func @_ffn_kernel(%arg0: i32, %arg1: memref<32x128xf32, #tpu.memory_space<vmem>>, %arg2: memref<128x256xf32, #tpu.memory_space<vmem>>, %arg3: memref<1x256xf32, #tpu.memory_space<vmem>>, %arg4: memref<256x128xf32, #tpu.memory_space<vmem>>, %arg5: memref<1x128xf32, #tpu.memory_space<vmem>>, %arg6: memref<32x128xf32, #tpu.memory_space<vmem>>) attributes {dimension_semantics = [#tpu.dimension_semantics<parallel>], iteration_bounds = array<i64: 1>, scalar_prefetch = 0 : i64, scratch_operands = 0 : i64, tpu.core_type = #tpu.core_type<tc>, window_params = [{transform_indices = @transform_0, window_bounds = array<i64: 32, 128>}, {pipeline_mode = #tpu.pipeline_mode<synchronous>, transform_indices = @transform_1, window_bounds = array<i64: 128, 256>}, {pipeline_mode = #tpu.pipeline_mode<synchronous>, transform_indices = @transform_2, window_bounds = array<i64: 1, 256>}, {pipeline_mode = #tpu.pipeline_mode<synchronous>, transform_indices = @transform_3, window_bounds = array<i64: 256, 128>}, {pipeline_mode = #tpu.pipeline_mode<synchronous>, transform_indices = @transform_4, window_bounds = array<i64: 1, 128>}, {transform_indices = @transform_5, window_bounds = array<i64: 32, 128>}]} {
    %c0 = arith.constant 0 : index
    %c0_0 = arith.constant 0 : index
    %0 = vector.load %arg1[%c0, %c0_0] : memref<32x128xf32, #tpu.memory_space<vmem>>, vector<32x128xf32>
    %c0_1 = arith.constant 0 : index
    %c0_2 = arith.constant 0 : index
    %1 = vector.load %arg2[%c0_1, %c0_2] : memref<128x256xf32, #tpu.memory_space<vmem>>, vector<128x256xf32>
    %cst = arith.constant dense<0.000000e+00> : vector<32x256xf32>
    %2 = tpu.matmul %0, %1, %cst {dimension_numbers = #tpu.dot_dimension_numbers<[1], [0], [0], [1], [0, 0, 1, 1], [], []>} : vector<32x128xf32>, vector<128x256xf32>, vector<32x256xf32> -> vector<32x256xf32>
    %c0_3 = arith.constant 0 : index
    %c0_4 = arith.constant 0 : index
    %3 = vector.load %arg3[%c0_3, %c0_4] : memref<1x256xf32, #tpu.memory_space<vmem>>, vector<1x256xf32>
    %4 = vector.broadcast %3 : vector<1x256xf32> to vector<32x256xf32>
    %5 = arith.addf %2, %4 : vector<32x256xf32>
    %cst_5 = arith.constant 0.000000e+00 : f32
    %6 = vector.broadcast %cst_5 : f32 to vector<32x256xf32>
    %7 = arith.maximumf %5, %6 : vector<32x256xf32>
    %c0_6 = arith.constant 0 : index
    %c0_7 = arith.constant 0 : index
    %8 = vector.load %arg4[%c0_6, %c0_7] : memref<256x128xf32, #tpu.memory_space<vmem>>, vector<256x128xf32>
    %cst_8 = arith.constant dense<0.000000e+00> : vector<32x128xf32>
    %9 = tpu.matmul %7, %8, %cst_8 {dimension_numbers = #tpu.dot_dimension_numbers<[1], [0], [0], [1], [0, 0, 1, 1], [], []>} : vector<32x256xf32>, vector<256x128xf32>, vector<32x128xf32> -> vector<32x128xf32>
    %c0_9 = arith.constant 0 : index
    %c0_10 = arith.constant 0 : index
    %10 = vector.load %arg5[%c0_9, %c0_10] : memref<1x128xf32, #tpu.memory_space<vmem>>, vector<1x128xf32>
    %11 = vector.broadcast %10 : vector<1x128xf32> to vector<32x128xf32>
    %12 = arith.addf %9, %11 : vector<32x128xf32>
    %c0_11 = arith.constant 0 : index
    %c0_12 = arith.constant 0 : index
    %13 = vector.load %arg6[%c0_11, %c0_12] : memref<32x128xf32, #tpu.memory_space<vmem>>, vector<32x128xf32>
    tpu.vector_store %arg6[%c0_11, %c0_12], %12 {strides = array<i32>} : memref<32x128xf32, #tpu.memory_space<vmem>>, vector<32x128xf32>,
    return
  }
  func.func @transform_0(%arg0: i32) -> (i32, i32) {
    %c0_i32 = arith.constant 0 : i32
    %c0_i32_0 = arith.constant 0 : i32
    return %arg0, %c0_i32 : i32, i32
  }
  func.func @transform_1(%arg0: i32) -> (i32, i32) {
    %c0_i32 = arith.constant 0 : i32
    %c0_i32_0 = arith.constant 0 : i32
    %c0_i32_1 = arith.constant 0 : i32
    return %c0_i32, %c0_i32_0 : i32, i32
  }
  func.func @transform_2(%arg0: i32) -> (i32, i32) {
    %c0_i32 = arith.constant 0 : i32
    %c0_i32_0 = arith.constant 0 : i32
    %c0_i32_1 = arith.constant 0 : i32
    return %c0_i32, %c0_i32_0 : i32, i32
  }
  func.func @transform_3(%arg0: i32) -> (i32, i32) {
    %c0_i32 = arith.constant 0 : i32
    %c0_i32_0 = arith.constant 0 : i32
    %c0_i32_1 = arith.constant 0 : i32
    return %c0_i32, %c0_i32_0 : i32, i32
  }
  func.func @transform_4(%arg0: i32) -> (i32, i32) {
    %c0_i32 = arith.constant 0 : i32
    %c0_i32_0 = arith.constant 0 : i32
    %c0_i32_1 = arith.constant 0 : i32
    return %c0_i32, %c0_i32_0 : i32, i32
  }
  func.func @transform_5(%arg0: i32) -> (i32, i32) {
    %c0_i32 = arith.constant 0 : i32
    %c0_i32_0 = arith.constant 0 : i32
    return %arg0, %c0_i32 : i32, i32
  }
}

</mosaic_0001>

<llo_original>
// kernel: _lambda_.8
$region0: #{_lambda_.8}
  #allocation0 [shape = 'u32[]', space=smem, size = 0x4, offset = 0x4, fixed_abs, tag = 'smem constant byte address 0x4 - core index']
  #allocation1 [shape = 'u32[144,128]{1,0:T(1,128)}', space=vmem, size = 0x12000, scoped, tag = 'internal scratch']
  %s0 = inlined_call_operand.vmem [shape: f32[32,128], index: 0, kind: input, shape index: {}]
  %s1 = inlined_call_operand.vmem [shape: f32[128,128], index: 1, kind: input, shape index: {}]
  %s2 = inlined_call_operand.vmem [shape: f32[32,128], index: 2, kind: output, shape index: {}]
  %s3 = sld [smem:[#allocation0]]
  $region18: #{_lambda_.8} parent=0
    _
  %s5 = ssub.s32 1, %s3
  %s6 = scalar_select 0, %s5, %s3
  // Predicated region
  $region2: #{_lambda_.8} parent=0 // pred_check
    _
  $region3: #{_lambda_.8} parent=0 // pred_check_branch
    %8 = sbr.rel (0) target = $region5
  $region4: #{_lambda_.8} parent=0 // pred_region
    _
  $region5: #{_lambda_.8} parent=0 // pred_fallthru
    _
  // Predicated region
  $region6: #{_lambda_.8} parent=0 // pred_check
    _
  $region7: #{_lambda_.8} parent=0 // pred_check_branch
    %10 = sbr.rel (0) target = $region9
  $region8: #{_lambda_.8} parent=0 // pred_region
    _
  $region9: #{_lambda_.8} parent=0 // pred_fallthru
    _
  %v11 = vld [vmem:[%s0] sm:$0xff]
  %v12 = vld [vmem:[%s0 + $0x8] sm:$0xff]
  %v13 = vld [vmem:[%s0 + $0x10] sm:$0xff]
  %v14 = vld [vmem:[%s0 + $0x18] sm:$0xff]
  %v15 = vld [vmem:[%s1] sm:$0xff]
  %v16 = vld [vmem:[%s1 + $0x8] sm:$0xff]
  %v17 = vld [vmem:[%s1 + $0x10] sm:$0xff]
  %v18 = vld [vmem:[%s1 + $0x18] sm:$0xff]
  %v19 = vld [vmem:[%s1 + $0x20] sm:$0xff]
  %v20 = vld [vmem:[%s1 + $0x28] sm:$0xff]
  %v21 = vld [vmem:[%s1 + $0x30] sm:$0xff]
  %v22 = vld [vmem:[%s1 + $0x38] sm:$0xff]
  %v23 = vld [vmem:[%s1 + $0x40] sm:$0xff]
  %v24 = vld [vmem:[%s1 + $0x48] sm:$0xff]
  %v25 = vld [vmem:[%s1 + $0x50] sm:$0xff]
  %v26 = vld [vmem:[%s1 + $0x58] sm:$0xff]
  %v27 = vld [vmem:[%s1 + $0x60] sm:$0xff]
  %v28 = vld [vmem:[%s1 + $0x68] sm:$0xff]
  %v29 = vld [vmem:[%s1 + $0x70] sm:$0xff]
  %v30 = vld [vmem:[%s1 + $0x78] sm:$0xff]
  %31 = vmatprep.subr.mxu0 0.0
  %32 = vmatpush1.msra.mxu0 %v30
  %33 = vmatprep.subr.mxu0 0.0
  %34 = vmatpush1.msra.mxu0 %v29
  %35 = vmatprep.subr.mxu0 0.0
  %36 = vmatpush1.msra.mxu0 %v28
  %37 = vmatprep.subr.mxu0 0.0
  %38 = vmatpush1.msra.mxu0 %v27
  %39 = vmatprep.subr.mxu0 0.0
  %40 = vmatpush1.msra.mxu0 %v26
  %41 = vmatprep.subr.mxu0 0.0
  %42 = vmatpush1.msra.mxu0 %v25
  %43 = vmatprep.subr.mxu0 0.0
  %44 = vmatpush1.msra.mxu0 %v24
  %45 = vmatprep.subr.mxu0 0.0
  %46 = vmatpush1.msra.mxu0 %v23
  %47 = vmatprep.subr.mxu0 0.0
  %48 = vmatpush1.msra.mxu0 %v22
  %49 = vmatprep.subr.mxu0 0.0
  %50 = vmatpush1.msra.mxu0 %v21
  %51 = vmatprep.subr.mxu0 0.0
  %52 = vmatpush1.msra.mxu0 %v20
  %53 = vmatprep.subr.mxu0 0.0
  %54 = vmatpush1.msra.mxu0 %v19
  %55 = vmatprep.subr.mxu0 0.0
  %56 = vmatpush1.msra.mxu0 %v18
  %57 = vmatprep.subr.mxu0 0.0
  %58 = vmatpush1.msra.mxu0 %v17
  %59 = vmatprep.subr.mxu0 0.0
  %60 = vmatpush1.msra.mxu0 %v16
  %61 = vmatprep.subr.mxu0 0.0
  %62 = vmatpush1.msra.mxu0 %v15
  %63 = vmatprep.subr.mxu0 0.0
  %64 = vmatpush2.msra.mxu0 0.0
  %65 = vmatprep.subr.mxu0 0.0
  %66 = vmatpush2.msra.mxu0 0.0
  %67 = vmatprep.subr.mxu0 0.0
  %68 = vmatpush2.msra.mxu0 0.0
  %69 = vmatprep.subr.mxu0 0.0
  %70 = vmatpush2.msra.mxu0 0.0
  %71 = vmatprep.subr.mxu0 0.0
  %72 = vmatpush2.msra.mxu0 0.0
  %73 = vmatprep.subr.mxu0 0.0
  %74 = vmatpush2.msra.mxu0 0.0
  %75 = vmatprep.subr.mxu0 0.0
  %76 = vmatpush2.msra.mxu0 0.0
  %77 = vmatprep.subr.mxu0 0.0
  %78 = vmatpush2.msra.mxu0 0.0
  %79 = vmatprep.subr.mxu0 0.0
  %80 = vmatpush2.msra.mxu0 0.0
  %81 = vmatprep.subr.mxu0 0.0
  %82 = vmatpush2.msra.mxu0 0.0
  %83 = vmatprep.subr.mxu0 0.0
  %84 = vmatpush2.msra.mxu0 0.0
  %85 = vmatprep.subr.mxu0 0.0
  %86 = vmatpush2.msra.mxu0 0.0
  %87 = vmatprep.subr.mxu0 0.0
  %88 = vmatpush2.msra.mxu0 0.0
  %89 = vmatprep.subr.mxu0 0.0
  %90 = vmatpush2.msra.mxu0 0.0
  %91 = vmatprep.subr.mxu0 0.0
  %92 = vmatpush2.msra.mxu0 0.0
  %93 = vmatprep.subr.mxu0 0.0
  %94 = vmatpush2.msra.mxu0 0.0
  %95 = vmatprep.mubr.f32.mxu0 0.0
  %96 = vmatmul.mubr.f32.gmra.mxu0 %v11
  %v97 = vpop.f32.mrf.mxu0
  %v98 = vadd.f32 0.0, %v97
  %v99 = vpop.f32.mrf.mxu0
  %100 = vmatprep.mubr.f32.mxu0 0.0
  %101 = vmatmul.mubr.f32.gmra.mxu0 %v12
  %v102 = vpop.f32.mrf.mxu0
  %v103 = vadd.f32 0.0, %v102
  %v104 = vpop.f32.mrf.mxu0
  %105 = vmatprep.mubr.f32.mxu0 0.0
  %106 = vmatmul.mubr.f32.gmra.mxu0 %v13
  %v107 = vpop.f32.mrf.mxu0
  %v108 = vadd.f32 0.0, %v107
  %v109 = vpop.f32.mrf.mxu0
  %110 = vmatprep.mubr.f32.mxu0 0.0
  %111 = vmatmul.mubr.f32.gmra.mxu0 %v14
  %v112 = vpop.f32.mrf.mxu0
  %v113 = vadd.f32 0.0, %v112
  %v114 = vpop.f32.mrf.mxu0
  %115 = vdwg.mxu0
  %116 = vst [vmem:[%s2] sm:$0xff] %v98
  %117 = vst [vmem:[%s2 + $0x8] sm:$0xff] %v103
  %118 = vst [vmem:[%s2 + $0x10] sm:$0xff] %v108
  %119 = vst [vmem:[%s2 + $0x18] sm:$0xff] %v113
  // Predicated region
  $region10: #{_lambda_.8} parent=0 // pred_check
    _
  $region11: #{_lambda_.8} parent=0 // pred_check_branch
    %121 = sbr.rel (0) target = $region13
  $region12: #{_lambda_.8} parent=0 // pred_region
    _
  $region13: #{_lambda_.8} parent=0 // pred_fallthru
    _
  // Predicated region
  $region14: #{_lambda_.8} parent=0 // pred_check
    _
  $region15: #{_lambda_.8} parent=0 // pred_check_branch
    %123 = sbr.rel (0) target = $region17
  $region16: #{_lambda_.8} parent=0 // pred_region
    _
  $region17: #{_lambda_.8} parent=0 // pred_fallthru
    _

// kernel: _lambda_.7
$region0: #{_lambda_.7}
  #allocation0 [shape = 'u32[]', space=smem, size = 0x4, offset = 0x4, fixed_abs, tag = 'smem constant byte address 0x4 - core index']
  #allocation1 [shape = 'u32[144,128]{1,0:T(1,128)}', space=vmem, size = 0x12000, scoped, tag = 'internal scratch']
  %s0 = inlined_call_operand.vmem [shape: f32[2,4,16,32], index: 0, kind: input, shape index: {}]
  %s1 = inlined_call_operand.vmem [shape: f32[2,4,16,32], index: 1, kind: input, shape index: {}]
  %s2 = inlined_call_operand.vmem [shape: f32[2,4,16,32], index: 2, kind: input, shape index: {}]
  %s3 = inlined_call_operand.vmem [shape: f32[2,4,16,32], index: 3, kind: output, shape index: {}]
  %s4 = sld [smem:[#allocation0]]
  $region45: #{_lambda_.7} parent=0
    _
  %s6 = ssub.s32 1, %s4
  %s7 = scalar_select 0, %s6, %s4
  loop: start=0, step=1, limit=10
  $region2: #{_lambda_.7} parent=0 // loop_pre_header
    _
  $region3: #{_lambda_.7} parent=0 // loop_header
    %s9 = sphi 0, %s13
    %p10 = scmp.ge.s32.totalorder %s9, 10
    %s16 = sphi 0, %s28
    %s17 = sphi 0, %s24
    %s18 = sphi 0, %s16
    %s19 = sphi 0, %s17
    %s20 = sphi 0, %s18
    %s21 = sphi 0, %s19
    %s33 = sphi 0, %s35
    %s36 = sphi 0, %s33
    %s37 = sphi 0, %s36
    %s53 = sphi 0, %s37
    %s61 = sphi 0, %s63
    %s64 = sphi 0, %s61
    %s65 = sphi 0, %s64
    %s81 = sphi 0, %s65
    %s89 = sphi 0, %s91
    %s92 = sphi 0, %s89
    %s93 = sphi 0, %s92
    %s109 = sphi 0, %s93
    %s117 = sphi 0, %s119
    %s120 = sphi 0, %s117
    %s121 = sphi 0, %s120
    %s137 = sphi 0, %s121
  $region4: #{_lambda_.7} parent=0 // loop_header_branch
    %12 = sbr.rel (%p10) target = $region8
  $region5: #{_lambda_.7} parent=0 // loop_body
    %s14 = ssub.s32 %s9, 1
    %s15 = ssub.s32 %s9, 2
    %s22 = sadd.s32 1, %s17
    %p23 = scmp.ge.s32.totalorder %s22, 4
    %s24 = scalar_select %p23, 0, %s22
    %s25 = sadd.s32 1, %s16
    %s26 = scalar_select %p23, %s25, %s16
    %p27 = scmp.ge.s32.totalorder %s26, 2
    %s28 = scalar_select %p27, 0, %s26
    %s29 = ssub.s32 %s16, %s28
    %s30 = ssub.s32 %s17, %s24
    %s31 = sor.u32 %s29, %s30
    %p32 = scmp.eq.s32.totalorder %s31, 0
    %s34 = sadd.s32 %s33, 1
    %s35 = scalar_select %p32, %s33, %s34
    %p38 = pneg %p32
    %p39 = scmp.eq.s32.totalorder %s9, 7
    %p40 = por %p38, %p39
    %p41 = scmp.ne.s32.totalorder %s33, %s36
    %p42 = scmp.eq.s32.totalorder %s9, 0
    %p43 = por %p41, %p42
    %p44 = scmp.ne.s32.totalorder %s33, %s36
    %p45 = scmp.eq.s32.totalorder %s14, 7
    %p46 = por %p44, %p45
    %p47 = scmp.ne.s32.totalorder %s36, %s37
    %p48 = scmp.eq.s32.totalorder %s14, 0
    %p49 = por %p47, %p48
    %p50 = scmp.ne.s32.totalorder %s36, %s37
    %p51 = scmp.eq.s32.totalorder %s15, 7
    %p52 = por %p50, %p51
    %p54 = scmp.ne.s32.totalorder %s37, %s53
    %p55 = scmp.eq.s32.totalorder %s15, 0
    %p56 = por %p54, %p55
    %s57 = ssub.s32 %s16, %s28
    %s58 = ssub.s32 %s17, %s24
    %s59 = sor.u32 %s57, %s58
    %p60 = scmp.eq.s32.totalorder %s59, 0
    %s62 = sadd.s32 %s61, 1
    %s63 = scalar_select %p60, %s61, %s62
    %p66 = pneg %p60
    %p67 = scmp.eq.s32.totalorder %s9, 7
    %p68 = por %p66, %p67
    %p69 = scmp.ne.s32.totalorder %s61, %s64
    %p70 = scmp.eq.s32.totalorder %s9, 0
    %p71 = por %p69, %p70
    %p72 = scmp.ne.s32.totalorder %s61, %s64
    %p73 = scmp.eq.s32.totalorder %s14, 7
    %p74 = por %p72, %p73
    %p75 = scmp.ne.s32.totalorder %s64, %s65
    %p76 = scmp.eq.s32.totalorder %s14, 0
    %p77 = por %p75, %p76
    %p78 = scmp.ne.s32.totalorder %s64, %s65
    %p79 = scmp.eq.s32.totalorder %s15, 7
    %p80 = por %p78, %p79
    %p82 = scmp.ne.s32.totalorder %s65, %s81
    %p83 = scmp.eq.s32.totalorder %s15, 0
    %p84 = por %p82, %p83
    %s85 = ssub.s32 %s16, %s28
    %s86 = ssub.s32 %s17, %s24
    %s87 = sor.u32 %s85, %s86
    %p88 = scmp.eq.s32.totalorder %s87, 0
    %s90 = sadd.s32 %s89, 1
    %s91 = scalar_select %p88, %s89, %s90
    %p94 = pneg %p88
    %p95 = scmp.eq.s32.totalorder %s9, 7
    %p96 = por %p94, %p95
    %p97 = scmp.ne.s32.totalorder %s89, %s92
    %p98 = scmp.eq.s32.totalorder %s9, 0
    %p99 = por %p97, %p98
    %p100 = scmp.ne.s32.totalorder %s89, %s92
    %p101 = scmp.eq.s32.totalorder %s14, 7
    %p102 = por %p100, %p101
    %p103 = scmp.ne.s32.totalorder %s92, %s93
    %p104 = scmp.eq.s32.totalorder %s14, 0
    %p105 = por %p103, %p104
    %p106 = scmp.ne.s32.totalorder %s92, %s93
    %p107 = scmp.eq.s32.totalorder %s15, 7
    %p108 = por %p106, %p107
    %p110 = scmp.ne.s32.totalorder %s93, %s109
    %p111 = scmp.eq.s32.totalorder %s15, 0
    %p112 = por %p110, %p111
    %s113 = ssub.s32 %s16, %s28
    %s114 = ssub.s32 %s17, %s24
    %s115 = sor.u32 %s113, %s114
    %p116 = scmp.eq.s32.totalorder %s115, 0
    %s118 = sadd.s32 %s117, 1
    %s119 = scalar_select %p116, %s117, %s118
    %p122 = pneg %p116
    %p123 = scmp.eq.s32.totalorder %s9, 7
    %p124 = por %p122, %p123
    %p125 = scmp.ne.s32.totalorder %s117, %s120
    %p126 = scmp.eq.s32.totalorder %s9, 0
    %p127 = por %p125, %p126
    %p128 = scmp.ne.s32.totalorder %s117, %s120
    %p129 = scmp.eq.s32.totalorder %s14, 7
    %p130 = por %p128, %p129
    %p131 = scmp.ne.s32.totalorder %s120, %s121
    %p132 = scmp.eq.s32.totalorder %s14, 0
    %p133 = por %p131, %p132
    %p134 = scmp.ne.s32.totalorder %s120, %s121
    %p135 = scmp.eq.s32.totalorder %s15, 7
    %p136 = por %p134, %p135
    %p138 = scmp.ne.s32.totalorder %s121, %s137
    %p139 = scmp.eq.s32.totalorder %s15, 0
    %p140 = por %p138, %p139
    %p141 = scmp.le.s32.totalorder 1, %s9
    %p142 = scmp.lt.s32.totalorder %s9, 9
    %p143 = pnand %p141, %p142
    %p144 = pneg %p143
    // Predicated region
    $region9: #{_lambda_.7} parent=5 // pred_check
      _
    $region10: #{_lambda_.7} parent=5 // pred_check_branch
      %146 = sbr.rel (%p143) target = $region12
    $region11: #{_lambda_.7} parent=5 // pred_region
      %s147 = ssub.s32 %s9, 1
    $region12: #{_lambda_.7} parent=5 // pred_fallthru
      _
    %p148 = scmp.lt.s32.totalorder %s9, 8
    // Predicated region
    $region13: #{_lambda_.7} parent=5 // pred_check
      %p149 = pneg %p148
    $region14: #{_lambda_.7} parent=5 // pred_check_branch
      %151 = sbr.rel (%p149) target = $region16
    $region15: #{_lambda_.7} parent=5 // pred_region
      // Predicated region
      $region17: #{_lambda_.7} parent=15 // pred_check
        %p152 = pneg %p43
      $region18: #{_lambda_.7} parent=15 // pred_check_branch
        %154 = sbr.rel (%p152) target = $region20
      $region19: #{_lambda_.7} parent=15 // pred_region
        %p155 = scmp.lt.s32.totalorder %s16, 1
        %s156 = scalar_select %p155, %s16, 1
        %p157 = scmp.lt.s32.totalorder %s17, 3
        %s158 = scalar_select %p157, %s17, 3
        %s159 = smul.addr %s158, 2
        %s160 = smul.addr %s156, 8
        %s161 = sadd.s32 %s159, %s160
        %s162 = smul.addr %s161, 8
        %s163 = scalar_lea.vmem %s0, %s162
      $region20: #{_lambda_.7} parent=15 // pred_fallthru
        _
      // Predicated region
      $region21: #{_lambda_.7} parent=15 // pred_check
        %p164 = pneg %p71
      $region22: #{_lambda_.7} parent=15 // pred_check_branch
        %166 = sbr.rel (%p164) target = $region24
      $region23: #{_lambda_.7} parent=15 // pred_region
        %p167 = scmp.lt.s32.totalorder %s16, 1
        %s168 = scalar_select %p167, %s16, 1
        %p169 = scmp.lt.s32.totalorder %s17, 3
        %s170 = scalar_select %p169, %s17, 3
        %s171 = smul.addr %s170, 2
        %s172 = smul.addr %s168, 8
        %s173 = sadd.s32 %s171, %s172
        %s174 = smul.addr %s173, 8
        %s175 = scalar_lea.vmem %s1, %s174
      $region24: #{_lambda_.7} parent=15 // pred_fallthru
        _
      // Predicated region
      $region25: #{_lambda_.7} parent=15 // pred_check
        %p176 = pneg %p99
      $region26: #{_lambda_.7} parent=15 // pred_check_branch
        %178 = sbr.rel (%p176) target = $region28
      $region27: #{_lambda_.7} parent=15 // pred_region
        %p179 = scmp.lt.s32.totalorder %s16, 1
        %s180 = scalar_select %p179, %s16, 1
        %p181 = scmp.lt.s32.totalorder %s17, 3
        %s182 = scalar_select %p181, %s17, 3
        %s183 = smul.addr %s182, 2
        %s184 = smul.addr %s180, 8
        %s185 = sadd.s32 %s183, %s184
        %s186 = smul.addr %s185, 8
        %s187 = scalar_lea.vmem %s2, %s186
      $region28: #{_lambda_.7} parent=15 // pred_fallthru
        _
    $region16: #{_lambda_.7} parent=5 // pred_fallthru
      _
    %p188 = scmp.le.s32.totalorder 1, %s9
    %p189 = scmp.lt.s32.totalorder %s9, 9
    %p190 = pnand %p188, %p189
    %p191 = pneg %p190
    // Predicated region
    $region29: #{_lambda_.7} parent=5 // pred_check
      _
    $region30: #{_lambda_.7} parent=5 // pred_check_branch
      %193 = sbr.rel (%p190) target = $region32
    $region31: #{_lambda_.7} parent=5 // pred_region
      %s194 = ssub.s32 %s9, 1
      %p195 = scmp.lt.s32.totalorder %s18, 1
      %s196 = scalar_select %p195, %s18, 1
      %p197 = scmp.lt.s32.totalorder %s19, 3
      %s198 = scalar_select %p197, %s19, 3
      %s199 = smul.addr %s198, 2
      %s200 = smul.addr %s196, 8
      %s201 = sadd.s32 %s199, %s200
      %s202 = smul.addr %s201, 8
      %s203 = scalar_lea.vmem %s0, %s202
      %p204 = pneg %p49
      %p205 = pneg %p46
      %p206 = scmp.lt.s32.totalorder %s18, 1
      %s207 = scalar_select %p206, %s18, 1
      %p208 = scmp.lt.s32.totalorder %s19, 3
      %s209 = scalar_select %p208, %s19, 3
      %s210 = smul.addr %s209, 2
      %s211 = smul.addr %s207, 8
      %s212 = sadd.s32 %s210, %s211
      %s213 = smul.addr %s212, 8
      %s214 = scalar_lea.vmem %s1, %s213
      %p215 = pneg %p77
      %p216 = pneg %p74
      %p217 = scmp.lt.s32.totalorder %s18, 1
      %s218 = scalar_select %p217, %s18, 1
      %p219 = scmp.lt.s32.totalorder %s19, 3
      %s220 = scalar_select %p219, %s19, 3
      %s221 = smul.addr %s220, 2
      %s222 = smul.addr %s218, 8
      %s223 = sadd.s32 %s221, %s222
      %s224 = smul.addr %s223, 8
      %s225 = scalar_lea.vmem %s2, %s224
      %p226 = pneg %p105
      %p227 = pneg %p102
      %p228 = pneg %p133
      %p229 = pneg %p130
      %p230 = scmp.lt.s32.totalorder %s18, 1
      %s231 = scalar_select %p230, %s18, 1
      %p232 = scmp.lt.s32.totalorder %s19, 3
      %s233 = scalar_select %p232, %s19, 3
      %s234 = smul.addr %s233, 2
      %s235 = smul.addr %s231, 8
      %s236 = sadd.s32 %s234, %s235
      %s237 = smul.addr %s236, 8
      %s238 = scalar_lea.vmem %s3, %s237
      %p239 = scmp.lt.s32.totalorder %s18, 1
      %s240 = scalar_select %p239, %s18, 1
      %p241 = scmp.lt.s32.totalorder %s19, 3
      %s242 = scalar_select %p241, %s19, 3
      %s243 = smul.addr %s242, 2
      %s244 = smul.addr %s240, 8
      %s245 = sadd.s32 %s243, %s244
      %s246 = smul.addr %s245, 8
      %s247 = scalar_lea.vmem %s0, %s246
      %p248 = scmp.lt.s32.totalorder %s18, 1
      %s249 = scalar_select %p248, %s18, 1
      %p250 = scmp.lt.s32.totalorder %s19, 3
      %s251 = scalar_select %p250, %s19, 3
      %s252 = smul.addr %s251, 2
      %s253 = smul.addr %s249, 8
      %s254 = sadd.s32 %s252, %s253
      %s255 = smul.addr %s254, 8
      %s256 = scalar_lea.vmem %s1, %s255
      %p257 = scmp.lt.s32.totalorder %s18, 1
      %s258 = scalar_select %p257, %s18, 1
      %p259 = scmp.lt.s32.totalorder %s19, 3
      %s260 = scalar_select %p259, %s19, 3
      %s261 = smul.addr %s260, 2
      %s262 = smul.addr %s258, 8
      %s263 = sadd.s32 %s261, %s262
      %s264 = smul.addr %s263, 8
      %s265 = scalar_lea.vmem %s2, %s264
      %p266 = scmp.lt.s32.totalorder %s18, 1
      %s267 = scalar_select %p266, %s18, 1
      %p268 = scmp.lt.s32.totalorder %s19, 3
      %s269 = scalar_select %p268, %s19, 3
      %s270 = smul.addr %s269, 2
      %s271 = smul.addr %s267, 8
      %s272 = sadd.s32 %s270, %s271
      %s273 = smul.addr %s272, 8
      %s274 = scalar_lea.vmem %s3, %s273
      %v275 = vld [vmem:[%s247] sm:$0xff]
      %v276 = vld [vmem:[%s247 + $0x8] sm:$0xff]
      %v277 = vld [vmem:[%s256] sm:$0xff]
      %v278 = vld [vmem:[%s256 + $0x8] sm:$0xff]
      %v279 = vld [vmem:[%s265] sm:$0xff]
      %v280 = vld [vmem:[%s265 + $0x8] sm:$0xff]
      %vm281 = vcmask 261120
      %v283 = vsel %vm281, %v275, 0
      %v286 = vsel %vm281, %v276, 0
      %v289 = vsel %vm281, %v277, 0
      %v292 = vsel %vm281, %v278, 0
      %294 = vmatprep.subr.mxu0 0.0
      %295 = vmatpush1.xpose.msra.mxu0 0.0
      %296 = vmatprep.subr.mxu0 0.0
      %297 = vmatpush1.xpose.msra.mxu0 0.0
      %298 = vmatprep.subr.mxu0 0.0
      %299 = vmatpush1.xpose.msra.mxu0 0.0
      %300 = vmatprep.subr.mxu0 0.0
      %301 = vmatpush1.xpose.msra.mxu0 0.0
      %302 = vmatprep.subr.mxu0 0.0
      %303 = vmatpush1.xpose.msra.mxu0 0.0
      %304 = vmatprep.subr.mxu0 0.0
      %305 = vmatpush1.xpose.msra.mxu0 0.0
      %306 = vmatprep.subr.mxu0 0.0
      %307 = vmatpush1.xpose.msra.mxu0 0.0
      %308 = vmatprep.subr.mxu0 0.0
      %309 = vmatpush1.xpose.msra.mxu0 0.0
      %310 = vmatprep.subr.mxu0 0.0
      %311 = vmatpush1.xpose.msra.mxu0 0.0
      %312 = vmatprep.subr.mxu0 0.0
      %313 = vmatpush1.xpose.msra.mxu0 0.0
      %314 = vmatprep.subr.mxu0 0.0
      %315 = vmatpush1.xpose.msra.mxu0 0.0
      %316 = vmatprep.subr.mxu0 0.0
      %317 = vmatpush1.xpose.msra.mxu0 0.0
      %318 = vmatprep.subr.mxu0 0.0
      %319 = vmatpush1.xpose.msra.mxu0 0.0
      %320 = vmatprep.subr.mxu0 0.0
      %321 = vmatpush1.xpose.msra.mxu0 0.0
      %322 = vmatprep.subr.mxu0 0.0
      %323 = vmatpush1.xpose.msra.mxu0 %v292
      %324 = vmatprep.subr.mxu0 0.0
      %325 = vmatpush1.xpose.msra.mxu0 %v289
      %326 = vmatprep.subr.mxu0 0.0
      %327 = vmatpush2.xpose.msra.mxu0 0.0
      %328 = vmatprep.subr.mxu0 0.0
      %329 = vmatpush2.xpose.msra.mxu0 0.0
      %330 = vmatprep.subr.mxu0 0.0
      %331 = vmatpush2.xpose.msra.mxu0 0.0
      %332 = vmatprep.subr.mxu0 0.0
      %333 = vmatpush2.xpose.msra.mxu0 0.0
      %334 = vmatprep.subr.mxu0 0.0
      %335 = vmatpush2.xpose.msra.mxu0 0.0
      %336 = vmatprep.subr.mxu0 0.0
      %337 = vmatpush2.xpose.msra.mxu0 0.0
      %338 = vmatprep.subr.mxu0 0.0
      %339 = vmatpush2.xpose.msra.mxu0 0.0
      %340 = vmatprep.subr.mxu0 0.0
      %341 = vmatpush2.xpose.msra.mxu0 0.0
      %342 = vmatprep.subr.mxu0 0.0
      %343 = vmatpush2.xpose.msra.mxu0 0.0
      %344 = vmatprep.subr.mxu0 0.0
      %345 = vmatpush2.xpose.msra.mxu0 0.0
      %346 = vmatprep.subr.mxu0 0.0
      %347 = vmatpush2.xpose.msra.mxu0 0.0
      %348 = vmatprep.subr.mxu0 0.0
      %349 = vmatpush2.xpose.msra.mxu0 0.0
      %350 = vmatprep.subr.mxu0 0.0
      %351 = vmatpush2.xpose.msra.mxu0 0.0
      %352 = vmatprep.subr.mxu0 0.0
      %353 = vmatpush2.xpose.msra.mxu0 0.0
      %354 = vmatprep.subr.mxu0 0.0
      %355 = vmatpush2.xpose.msra.mxu0 0.0
      %356 = vmatprep.subr.mxu0 0.0
      %357 = vmatpush2.xpose.msra.mxu0 0.0
      %358 = vmatprep.mubr.f32.mxu0 0.0
      %359 = vmatmul.mubr.f32.gmra.mxu0 %v283
      %v360 = vpop.f32.mrf.mxu0
      %v361 = vadd.f32 0.0, %v360
      %v362 = vpop.f32.mrf.mxu0
      %363 = vmatprep.mubr.f32.mxu0 0.0
      %364 = vmatmul.mubr.f32.gmra.mxu0 %v286
      %v365 = vpop.f32.mrf.mxu0
      %v366 = vadd.f32 0.0, %v365
      %v367 = vpop.f32.mrf.mxu0
      %368 = vdwg.mxu0
      %v369 = vmul.f32 %v361, 0.17677669
      %v370 = vmul.f32 %v366, 0.17677669
      %vm371 = vcmask 130048
      %v372 = vsel %vm371, %v369, -inf
      %373 = vmax.xlane.f32.xlu0 %v372
      %v374 = vpop.xlane.xlu0 %373
      %v375 = vsel %vm371, %v370, -inf
      %376 = vmax.xlane.f32.xlu0 %v375
      %v377 = vpop.xlane.xlu0 %376
      %v378 = vsub.f32 %v369, %v374
      %v379 = vsub.f32 %v370, %v377
      %v380 = vmul.f32 %v378, 1.442695
      %v381 = vpow.pop %v380
      %v382 = vmul.f32 %v379, 1.442695
      %v383 = vpow.pop %v382
      %v384 = vsel %vm371, %v381, 0.0
      %385 = vadd.xlane.f32.xlu0 %v384
      %v386 = vpop.xlane.xlu0 %385
      %v387 = vsel %vm371, %v383, 0.0
      %388 = vadd.xlane.f32.xlu0 %v387
      %v389 = vpop.xlane.xlu0 %388
      %v390 = vrcp.pop %v386
      %v391 = vmul.f32 %v381, %v390
      %v392 = vrcp.pop %v389
      %v393 = vmul.f32 %v383, %v392
      %v395 = vsel %vm371, %v391, 0
      %v398 = vsel %vm371, %v393, 0
      %400 = vmatprep.subr.mxu0 0.0
      %401 = vmatpush1.msra.mxu0 0.0
      %402 = vmatprep.subr.mxu0 0.0
      %403 = vmatpush1.msra.mxu0 0.0
      %404 = vmatprep.subr.mxu0 0.0
      %405 = vmatpush1.msra.mxu0 0.0
      %406 = vmatprep.subr.mxu0 0.0
      %407 = vmatpush1.msra.mxu0 0.0
      %408 = vmatprep.subr.mxu0 0.0
      %409 = vmatpush1.msra.mxu0 0.0
      %410 = vmatprep.subr.mxu0 0.0
      %411 = vmatpush1.msra.mxu0 0.0
      %412 = vmatprep.subr.mxu0 0.0
      %413 = vmatpush1.msra.mxu0 0.0
      %414 = vmatprep.subr.mxu0 0.0
      %415 = vmatpush1.msra.mxu0 0.0
      %416 = vmatprep.subr.mxu0 0.0
      %417 = vmatpush1.msra.mxu0 0.0
      %418 = vmatprep.subr.mxu0 0.0
      %419 = vmatpush1.msra.mxu0 0.0
      %420 = vmatprep.subr.mxu0 0.0
      %421 = vmatpush1.msra.mxu0 0.0
      %422 = vmatprep.subr.mxu0 0.0
      %423 = vmatpush1.msra.mxu0 0.0
      %424 = vmatprep.subr.mxu0 0.0
      %425 = vmatpush1.msra.mxu0 0.0
      %426 = vmatprep.subr.mxu0 0.0
      %427 = vmatpush1.msra.mxu0 0.0
      %428 = vmatprep.subr.mxu0 0.0
      %429 = vmatpush1.msra.mxu0 %v280
      %430 = vmatprep.subr.mxu0 0.0
      %431 = vmatpush1.msra.mxu0 %v279
      %432 = vmatprep.subr.mxu0 0.0
      %433 = vmatpush2.msra.mxu0 0.0
      %434 = vmatprep.subr.mxu0 0.0
      %435 = vmatpush2.msra.mxu0 0.0
      %436 = vmatprep.subr.mxu0 0.0
      %437 = vmatpush2.msra.mxu0 0.0
      %438 = vmatprep.subr.mxu0 0.0
      %439 = vmatpush2.msra.mxu0 0.0
      %440 = vmatprep.subr.mxu0 0.0
      %441 = vmatpush2.msra.mxu0 0.0
      %442 = vmatprep.subr.mxu0 0.0
      %443 = vmatpush2.msra.mxu0 0.0
      %444 = vmatprep.subr.mxu0 0.0
      %445 = vmatpush2.msra.mxu0 0.0
      %446 = vmatprep.subr.mxu0 0.0
      %447 = vmatpush2.msra.mxu0 0.0
      %448 = vmatprep.subr.mxu0 0.0
      %449 = vmatpush2.msra.mxu0 0.0
      %450 = vmatprep.subr.mxu0 0.0
      %451 = vmatpush2.msra.mxu0 0.0
      %452 = vmatprep.subr.mxu0 0.0
      %453 = vmatpush2.msra.mxu0 0.0
      %454 = vmatprep.subr.mxu0 0.0
      %455 = vmatpush2.msra.mxu0 0.0
      %456 = vmatprep.subr.mxu0 0.0
      %457 = vmatpush2.msra.mxu0 0.0
      %458 = vmatprep.subr.mxu0 0.0
      %459 = vmatpush2.msra.mxu0 0.0
      %460 = vmatprep.subr.mxu0 0.0
      %461 = vmatpush2.msra.mxu0 0.0
      %462 = vmatprep.subr.mxu0 0.0
      %463 = vmatpush2.msra.mxu0 0.0
      %464 = vmatprep.mubr.f32.mxu0 0.0
      %465 = vmatmul.mubr.f32.gmra.mxu0 %v395
      %v466 = vpop.f32.mrf.mxu0
      %v467 = vadd.f32 0.0, %v466
      %v468 = vpop.f32.mrf.mxu0
      %469 = vmatprep.mubr.f32.mxu0 0.0
      %470 = vmatmul.mubr.f32.gmra.mxu0 %v398
      %v471 = vpop.f32.mrf.mxu0
      %v472 = vadd.f32 0.0, %v471
      %v473 = vpop.f32.mrf.mxu0
      %474 = vdwg.mxu0
      %475 = vst.msk [vmem:[%s274] sm:$0xff] %vm281, %v467
      %476 = vst.msk [vmem:[%s274 + $0x8] sm:$0xff] %vm281, %v472
      %p477 = scmp.lt.s32.totalorder %s18, 1
      %s478 = scalar_select %p477, %s18, 1
      %p479 = scmp.lt.s32.totalorder %s19, 3
      %s480 = scalar_select %p479, %s19, 3
      %s481 = smul.addr %s480, 2
      %s482 = smul.addr %s478, 8
      %s483 = sadd.s32 %s481, %s482
      %s484 = smul.addr %s483, 8
      %s485 = scalar_lea.vmem %s3, %s484
      // Predicated region
      $region33: #{_lambda_.7} parent=31 // pred_check
        %p486 = pneg %p130
      $region34: #{_lambda_.7} parent=31 // pred_check_branch
        %488 = sbr.rel (%p486) target = $region36
      $region35: #{_lambda_.7} parent=31 // pred_region
        _
      $region36: #{_lambda_.7} parent=31 // pred_fallthru
        _
    $region32: #{_lambda_.7} parent=5 // pred_fallthru
      _
    %p489 = scmp.le.s32.totalorder 2, %s9
    // Predicated region
    $region37: #{_lambda_.7} parent=5 // pred_check
      %p490 = pneg %p489
    $region38: #{_lambda_.7} parent=5 // pred_check_branch
      %492 = sbr.rel (%p490) target = $region40
    $region39: #{_lambda_.7} parent=5 // pred_region
      %s493 = ssub.s32 %s9, 2
      // Predicated region
      $region41: #{_lambda_.7} parent=39 // pred_check
        %p494 = pneg %p136
      $region42: #{_lambda_.7} parent=39 // pred_check_branch
        %496 = sbr.rel (%p494) target = $region44
      $region43: #{_lambda_.7} parent=39 // pred_region
        %p497 = scmp.lt.s32.totalorder %s20, 1
        %s498 = scalar_select %p497, %s20, 1
        %p499 = scmp.lt.s32.totalorder %s21, 3
        %s500 = scalar_select %p499, %s21, 3
        %s501 = smul.addr %s500, 2
        %s502 = smul.addr %s498, 8
        %s503 = sadd.s32 %s501, %s502
        %s504 = smul.addr %s503, 8
        %s505 = scalar_lea.vmem %s3, %s504
      $region44: #{_lambda_.7} parent=39 // pred_fallthru
        _
    $region40: #{_lambda_.7} parent=5 // pred_fallthru
      _
  $region6: #{_lambda_.7} parent=0 // loop_footer
    %s13 = sadd.s32 1, %s9
  $region7: #{_lambda_.7} parent=0 // loop_footer_branch
    %8 = sbr.rel target = $region3
  $region8: #{_lambda_.7} parent=0 // loop_exit
    _

// kernel: _lambda_.6
$region0: #{_lambda_.6}
  #allocation0 [shape = 'u32[]', space=smem, size = 0x4, offset = 0x4, fixed_abs, tag = 'smem constant byte address 0x4 - core index']
  #allocation1 [shape = 'u32[144,128]{1,0:T(1,128)}', space=vmem, size = 0x12000, scoped, tag = 'internal scratch']
  %s0 = inlined_call_operand.vmem [shape: f32[32,128], index: 0, kind: input, shape index: {}]
  %s1 = inlined_call_operand.vmem [shape: f32[128,384], index: 1, kind: input, shape index: {}]
  %s2 = inlined_call_operand.vmem [shape: f32[32,384], index: 2, kind: output, shape index: {}]
  %s3 = sld [smem:[#allocation0]]
  $region18: #{_lambda_.6} parent=0
    _
  %s5 = ssub.s32 1, %s3
  %s6 = scalar_select 0, %s5, %s3
  // Predicated region
  $region2: #{_lambda_.6} parent=0 // pred_check
    _
  $region3: #{_lambda_.6} parent=0 // pred_check_branch
    %8 = sbr.rel (0) target = $region5
  $region4: #{_lambda_.6} parent=0 // pred_region
    _
  $region5: #{_lambda_.6} parent=0 // pred_fallthru
    _
  // Predicated region
  $region6: #{_lambda_.6} parent=0 // pred_check
    _
  $region7: #{_lambda_.6} parent=0 // pred_check_branch
    %10 = sbr.rel (0) target = $region9
  $region8: #{_lambda_.6} parent=0 // pred_region
    _
  $region9: #{_lambda_.6} parent=0 // pred_fallthru
    _
  %v11 = vld [vmem:[%s0] sm:$0xff]
  %v12 = vld [vmem:[%s0 + $0x8] sm:$0xff]
  %v13 = vld [vmem:[%s0 + $0x10] sm:$0xff]
  %v14 = vld [vmem:[%s0 + $0x18] sm:$0xff]
  %v15 = vld [vmem:[%s1] sm:$0xff]
  %v16 = vld [vmem:[%s1 + $0x8] sm:$0xff]
  %v17 = vld [vmem:[%s1 + $0x10] sm:$0xff]
  %v18 = vld [vmem:[%s1 + $0x18] sm:$0xff]
  %v19 = vld [vmem:[%s1 + $0x20] sm:$0xff]
  %v20 = vld [vmem:[%s1 + $0x28] sm:$0xff]
  %v21 = vld [vmem:[%s1 + $0x30] sm:$0xff]
  %v22 = vld [vmem:[%s1 + $0x38] sm:$0xff]
  %v23 = vld [vmem:[%s1 + $0x40] sm:$0xff]
  %v24 = vld [vmem:[%s1 + $0x48] sm:$0xff]
  %v25 = vld [vmem:[%s1 + $0x50] sm:$0xff]
  %v26 = vld [vmem:[%s1 + $0x58] sm:$0xff]
  %v27 = vld [vmem:[%s1 + $0x60] sm:$0xff]
  %v28 = vld [vmem:[%s1 + $0x68] sm:$0xff]
  %v29 = vld [vmem:[%s1 + $0x70] sm:$0xff]
  %v30 = vld [vmem:[%s1 + $0x78] sm:$0xff]
  %v31 = vld [vmem:[%s1 + $0x80] sm:$0xff]
  %v32 = vld [vmem:[%s1 + $0x88] sm:$0xff]
  %v33 = vld [vmem:[%s1 + $0x90] sm:$0xff]
  %v34 = vld [vmem:[%s1 + $0x98] sm:$0xff]
  %v35 = vld [vmem:[%s1 + $0xa0] sm:$0xff]
  %v36 = vld [vmem:[%s1 + $0xa8] sm:$0xff]
  %v37 = vld [vmem:[%s1 + $0xb0] sm:$0xff]
  %v38 = vld [vmem:[%s1 + $0xb8] sm:$0xff]
  %v39 = vld [vmem:[%s1 + $0xc0] sm:$0xff]
  %v40 = vld [vmem:[%s1 + $0xc8] sm:$0xff]
  %v41 = vld [vmem:[%s1 + $0xd0] sm:$0xff]
  %v42 = vld [vmem:[%s1 + $0xd8] sm:$0xff]
  %v43 = vld [vmem:[%s1 + $0xe0] sm:$0xff]
  %v44 = vld [vmem:[%s1 + $0xe8] sm:$0xff]
  %v45 = vld [vmem:[%s1 + $0xf0] sm:$0xff]
  %v46 = vld [vmem:[%s1 + $0xf8] sm:$0xff]
  %v47 = vld [vmem:[%s1 + $0x100] sm:$0xff]
  %v48 = vld [vmem:[%s1 + $0x108] sm:$0xff]
  %v49 = vld [vmem:[%s1 + $0x110] sm:$0xff]
  %v50 = vld [vmem:[%s1 + $0x118] sm:$0xff]
  %v51 = vld [vmem:[%s1 + $0x120] sm:$0xff]
  %v52 = vld [vmem:[%s1 + $0x128] sm:$0xff]
  %v53 = vld [vmem:[%s1 + $0x130] sm:$0xff]
  %v54 = vld [vmem:[%s1 + $0x138] sm:$0xff]
  %v55 = vld [vmem:[%s1 + $0x140] sm:$0xff]
  %v56 = vld [vmem:[%s1 + $0x148] sm:$0xff]
  %v57 = vld [vmem:[%s1 + $0x150] sm:$0xff]
  %v58 = vld [vmem:[%s1 + $0x158] sm:$0xff]
  %v59 = vld [vmem:[%s1 + $0x160] sm:$0xff]
  %v60 = vld [vmem:[%s1 + $0x168] sm:$0xff]
  %v61 = vld [vmem:[%s1 + $0x170] sm:$0xff]
  %v62 = vld [vmem:[%s1 + $0x178] sm:$0xff]
  %63 = vmatprep.subr.mxu0 %v61
  %64 = vmatpush1.msra.mxu0 %v60
  %65 = vmatprep.subr.mxu0 %v58
  %66 = vmatpush1.msra.mxu0 %v57
  %67 = vmatprep.subr.mxu0 %v55
  %68 = vmatpush1.msra.mxu0 %v54
  %69 = vmatprep.subr.mxu0 %v52
  %70 = vmatpush1.msra.mxu0 %v51
  %71 = vmatprep.subr.mxu0 %v49
  %72 = vmatpush1.msra.mxu0 %v48
  %73 = vmatprep.subr.mxu0 %v46
  %74 = vmatpush1.msra.mxu0 %v45
  %75 = vmatprep.subr.mxu0 %v43
  %76 = vmatpush1.msra.mxu0 %v42
  %77 = vmatprep.subr.mxu0 %v40
  %78 = vmatpush1.msra.mxu0 %v39
  %79 = vmatprep.subr.mxu0 %v37
  %80 = vmatpush1.msra.mxu0 %v36
  %81 = vmatprep.subr.mxu0 %v34
  %82 = vmatpush1.msra.mxu0 %v33
  %83 = vmatprep.subr.mxu0 %v31
  %84 = vmatpush1.msra.mxu0 %v30
  %85 = vmatprep.subr.mxu0 %v28
  %86 = vmatpush1.msra.mxu0 %v27
  %87 = vmatprep.subr.mxu0 %v25
  %88 = vmatpush1.msra.mxu0 %v24
  %89 = vmatprep.subr.mxu0 %v22
  %90 = vmatpush1.msra.mxu0 %v21
  %91 = vmatprep.subr.mxu0 %v19
  %92 = vmatpush1.msra.mxu0 %v18
  %93 = vmatprep.subr.mxu0 %v16
  %94 = vmatpush1.msra.mxu0 %v15
  %95 = vmatprep.subr.mxu0 0.0
  %96 = vmatpush2.msra.mxu0 0.0
  %97 = vmatprep.subr.mxu0 0.0
  %98 = vmatpush2.msra.mxu0 0.0
  %99 = vmatprep.subr.mxu0 0.0
  %100 = vmatpush2.msra.mxu0 0.0
  %101 = vmatprep.subr.mxu0 0.0
  %102 = vmatpush2.msra.mxu0 0.0
  %103 = vmatprep.subr.mxu0 0.0
  %104 = vmatpush2.msra.mxu0 0.0
  %105 = vmatprep.subr.mxu0 0.0
  %106 = vmatpush2.msra.mxu0 0.0
  %107 = vmatprep.subr.mxu0 0.0
  %108 = vmatpush2.msra.mxu0 0.0
  %109 = vmatprep.subr.mxu0 0.0
  %110 = vmatpush2.msra.mxu0 0.0
  %111 = vmatprep.subr.mxu0 0.0
  %112 = vmatpush2.msra.mxu0 0.0
  %113 = vmatprep.subr.mxu0 0.0
  %114 = vmatpush2.msra.mxu0 0.0
  %115 = vmatprep.subr.mxu0 0.0
  %116 = vmatpush2.msra.mxu0 0.0
  %117 = vmatprep.subr.mxu0 0.0
  %118 = vmatpush2.msra.mxu0 0.0
  %119 = vmatprep.subr.mxu0 0.0
  %120 = vmatpush2.msra.mxu0 0.0
  %121 = vmatprep.subr.mxu0 0.0
  %122 = vmatpush2.msra.mxu0 0.0
  %123 = vmatprep.subr.mxu0 0.0
  %124 = vmatpush2.msra.mxu0 0.0
  %125 = vmatprep.subr.mxu0 0.0
  %126 = vmatpush2.msra.mxu0 0.0
  %127 = vmatprep.mubr.f32.mxu0 0.0
  %128 = vmatmul.mubr.f32.gmra.mxu0 %v11
  %v129 = vpop.f32.mrf.mxu0
  %v130 = vadd.f32 0.0, %v129
  %v131 = vpop.f32.mrf.mxu0
  %v132 = vadd.f32 0.0, %v131
  %133 = vmatprep.mubr.f32.mxu0 0.0
  %134 = vmatmul.mubr.f32.gmra.mxu0 %v12
  %v135 = vpop.f32.mrf.mxu0
  %v136 = vadd.f32 0.0, %v135
  %v137 = vpop.f32.mrf.mxu0
  %v138 = vadd.f32 0.0, %v137
  %139 = vmatprep.mubr.f32.mxu0 0.0
  %140 = vmatmul.mubr.f32.gmra.mxu0 %v13
  %v141 = vpop.f32.mrf.mxu0
  %v142 = vadd.f32 0.0, %v141
  %v143 = vpop.f32.mrf.mxu0
  %v144 = vadd.f32 0.0, %v143
  %145 = vmatprep.mubr.f32.mxu0 0.0
  %146 = vmatmul.mubr.f32.gmra.mxu0 %v14
  %v147 = vpop.f32.mrf.mxu0
  %v148 = vadd.f32 0.0, %v147
  %v149 = vpop.f32.mrf.mxu0
  %v150 = vadd.f32 0.0, %v149
  %151 = vdwg.mxu0
  %152 = vmatprep.subr.mxu0 0.0
  %153 = vmatpush1.msra.mxu0 %v62
  %154 = vmatprep.subr.mxu0 0.0
  %155 = vmatpush1.msra.mxu0 %v59
  %156 = vmatprep.subr.mxu0 0.0
  %157 = vmatpush1.msra.mxu0 %v56
  %158 = vmatprep.subr.mxu0 0.0
  %159 = vmatpush1.msra.mxu0 %v53
  %160 = vmatprep.subr.mxu0 0.0
  %161 = vmatpush1.msra.mxu0 %v50
  %162 = vmatprep.subr.mxu0 0.0
  %163 = vmatpush1.msra.mxu0 %v47
  %164 = vmatprep.subr.mxu0 0.0
  %165 = vmatpush1.msra.mxu0 %v44
  %166 = vmatprep.subr.mxu0 0.0
  %167 = vmatpush1.msra.mxu0 %v41
  %168 = vmatprep.subr.mxu0 0.0
  %169 = vmatpush1.msra.mxu0 %v38
  %170 = vmatprep.subr.mxu0 0.0
  %171 = vmatpush1.msra.mxu0 %v35
  %172 = vmatprep.subr.mxu0 0.0
  %173 = vmatpush1.msra.mxu0 %v32
  %174 = vmatprep.subr.mxu0 0.0
  %175 = vmatpush1.msra.mxu0 %v29
  %176 = vmatprep.subr.mxu0 0.0
  %177 = vmatpush1.msra.mxu0 %v26
  %178 = vmatprep.subr.mxu0 0.0
  %179 = vmatpush1.msra.mxu0 %v23
  %180 = vmatprep.subr.mxu0 0.0
  %181 = vmatpush1.msra.mxu0 %v20
  %182 = vmatprep.subr.mxu0 0.0
  %183 = vmatpush1.msra.mxu0 %v17
  %184 = vmatprep.subr.mxu0 0.0
  %185 = vmatpush2.msra.mxu0 0.0
  %186 = vmatprep.subr.mxu0 0.0
  %187 = vmatpush2.msra.mxu0 0.0
  %188 = vmatprep.subr.mxu0 0.0
  %189 = vmatpush2.msra.mxu0 0.0
  %190 = vmatprep.subr.mxu0 0.0
  %191 = vmatpush2.msra.mxu0 0.0
  %192 = vmatprep.subr.mxu0 0.0
  %193 = vmatpush2.msra.mxu0 0.0
  %194 = vmatprep.subr.mxu0 0.0
  %195 = vmatpush2.msra.mxu0 0.0
  %196 = vmatprep.subr.mxu0 0.0
  %197 = vmatpush2.msra.mxu0 0.0
  %198 = vmatprep.subr.mxu0 0.0
  %199 = vmatpush2.msra.mxu0 0.0
  %200 = vmatprep.subr.mxu0 0.0
  %201 = vmatpush2.msra.mxu0 0.0
  %202 = vmatprep.subr.mxu0 0.0
  %203 = vmatpush2.msra.mxu0 0.0
  %204 = vmatprep.subr.mxu0 0.0
  %205 = vmatpush2.msra.mxu0 0.0
  %206 = vmatprep.subr.mxu0 0.0
  %207 = vmatpush2.msra.mxu0 0.0
  %208 = vmatprep.subr.mxu0 0.0
  %209 = vmatpush2.msra.mxu0 0.0
  %210 = vmatprep.subr.mxu0 0.0
  %211 = vmatpush2.msra.mxu0 0.0
  %212 = vmatprep.subr.mxu0 0.0
  %213 = vmatpush2.msra.mxu0 0.0
  %214 = vmatprep.subr.mxu0 0.0
  %215 = vmatpush2.msra.mxu0 0.0
  %216 = vmatprep.mubr.f32.mxu0 0.0
  %217 = vmatmul.mubr.f32.gmra.mxu0 %v11
  %v218 = vpop.f32.mrf.mxu0
  %v219 = vadd.f32 0.0, %v218
  %v220 = vpop.f32.mrf.mxu0
  %221 = vmatprep.mubr.f32.mxu0 0.0
  %222 = vmatmul.mubr.f32.gmra.mxu0 %v12
  %v223 = vpop.f32.mrf.mxu0
  %v224 = vadd.f32 0.0, %v223
  %v225 = vpop.f32.mrf.mxu0
  %226 = vmatprep.mubr.f32.mxu0 0.0
  %227 = vmatmul.mubr.f32.gmra.mxu0 %v13
  %v228 = vpop.f32.mrf.mxu0
  %v229 = vadd.f32 0.0, %v228
  %v230 = vpop.f32.mrf.mxu0
  %231 = vmatprep.mubr.f32.mxu0 0.0
  %232 = vmatmul.mubr.f32.gmra.mxu0 %v14
  %v233 = vpop.f32.mrf.mxu0
  %v234 = vadd.f32 0.0, %v233
  %v235 = vpop.f32.mrf.mxu0
  %236 = vdwg.mxu0
  %237 = vst [vmem:[%s2] sm:$0xff] %v130
  %238 = vst [vmem:[%s2 + $0x8] sm:$0xff] %v132
  %239 = vst [vmem:[%s2 + $0x10] sm:$0xff] %v219
  %240 = vst [vmem:[%s2 + $0x18] sm:$0xff] %v136
  %241 = vst [vmem:[%s2 + $0x20] sm:$0xff] %v138
  %242 = vst [vmem:[%s2 + $0x28] sm:$0xff] %v224
  %243 = vst [vmem:[%s2 + $0x30] sm:$0xff] %v142
  %244 = vst [vmem:[%s2 + $0x38] sm:$0xff] %v144
  %245 = vst [vmem:[%s2 + $0x40] sm:$0xff] %v229
  %246 = vst [vmem:[%s2 + $0x48] sm:$0xff] %v148
  %247 = vst [vmem:[%s2 + $0x50] sm:$0xff] %v150
  %248 = vst [vmem:[%s2 + $0x58] sm:$0xff] %v234
  // Predicated region
  $region10: #{_lambda_.6} parent=0 // pred_check
    _
  $region11: #{_lambda_.6} parent=0 // pred_check_branch
    %250 = sbr.rel (0) target = $region13
  $region12: #{_lambda_.6} parent=0 // pred_region
    _
  $region13: #{_lambda_.6} parent=0 // pred_fallthru
    _
  // Predicated region
  $region14: #{_lambda_.6} parent=0 // pred_check
    _
  $region15: #{_lambda_.6} parent=0 // pred_check_branch
    %252 = sbr.rel (0) target = $region17
  $region16: #{_lambda_.6} parent=0 // pred_region
    _
  $region17: #{_lambda_.6} parent=0 // pred_fallthru
    _

// kernel: _lambda_.9
$region0: #{_lambda_.9}
  #allocation0 [shape = 'u32[]', space=smem, size = 0x4, offset = 0x4, fixed_abs, tag = 'smem constant byte address 0x4 - core index']
  #allocation1 [shape = 'u32[144,128]{1,0:T(1,128)}', space=vmem, size = 0x12000, scoped, tag = 'internal scratch']
  %s0 = inlined_call_operand.vmem [shape: f32[32,128], index: 0, kind: input, shape index: {}]
  %s1 = inlined_call_operand.vmem [shape: f32[32,128], index: 1, kind: input, shape index: {}]
  %s2 = inlined_call_operand.vmem [shape: f32[1,128], index: 2, kind: input, shape index: {}]
  %s3 = inlined_call_operand.vmem [shape: f32[1,128], index: 3, kind: input, shape index: {}]
  %s4 = inlined_call_operand.vmem [shape: f32[32,128], index: 4, kind: output, shape index: {}]
  %s5 = sld [smem:[#allocation0]]
  $region26: #{_lambda_.9} parent=0
    _
  %s7 = ssub.s32 1, %s5
  %s8 = scalar_select 0, %s7, %s5
  // Predicated region
  $region2: #{_lambda_.9} parent=0 // pred_check
    _
  $region3: #{_lambda_.9} parent=0 // pred_check_branch
    %10 = sbr.rel (0) target = $region5
  $region4: #{_lambda_.9} parent=0 // pred_region
    _
  $region5: #{_lambda_.9} parent=0 // pred_fallthru
    _
  // Predicated region
  $region6: #{_lambda_.9} parent=0 // pred_check
    _
  $region7: #{_lambda_.9} parent=0 // pred_check_branch
    %12 = sbr.rel (0) target = $region9
  $region8: #{_lambda_.9} parent=0 // pred_region
    _
  $region9: #{_lambda_.9} parent=0 // pred_fallthru
    _
  // Predicated region
  $region10: #{_lambda_.9} parent=0 // pred_check
    _
  $region11: #{_lambda_.9} parent=0 // pred_check_branch
    %14 = sbr.rel (0) target = $region13
  $region12: #{_lambda_.9} parent=0 // pred_region
    _
  $region13: #{_lambda_.9} parent=0 // pred_fallthru
    _
  // Predicated region
  $region14: #{_lambda_.9} parent=0 // pred_check
    _
  $region15: #{_lambda_.9} parent=0 // pred_check_branch
    %16 = sbr.rel (0) target = $region17
  $region16: #{_lambda_.9} parent=0 // pred_region
    _
  $region17: #{_lambda_.9} parent=0 // pred_fallthru
    _
  %v17 = vld [vmem:[%s0] sm:$0xff]
  %v18 = vld [vmem:[%s0 + $0x8] sm:$0xff]
  %v19 = vld [vmem:[%s0 + $0x10] sm:$0xff]
  %v20 = vld [vmem:[%s0 + $0x18] sm:$0xff]
  %v21 = vld [vmem:[%s1] sm:$0xff]
  %v22 = vld [vmem:[%s1 + $0x8] sm:$0xff]
  %v23 = vld [vmem:[%s1 + $0x10] sm:$0xff]
  %v24 = vld [vmem:[%s1 + $0x18] sm:$0xff]
  %v25 = vadd.f32 %v17, %v21
  %v26 = vadd.f32 %v18, %v22
  %v27 = vadd.f32 %v19, %v23
  %v28 = vadd.f32 %v20, %v24
  %29 = vadd.xlane.f32.xlu0 %v25
  %v30 = vpop.xlane.xlu0 %29
  %31 = vadd.xlane.f32.xlu0 %v26
  %v32 = vpop.xlane.xlu0 %31
  %33 = vadd.xlane.f32.xlu0 %v27
  %v34 = vpop.xlane.xlu0 %33
  %35 = vadd.xlane.f32.xlu0 %v28
  %v36 = vpop.xlane.xlu0 %35
  %v37 = vrcp.pop 128.0
  %v38 = vmul.f32 %v30, %v37
  %v39 = vmul.f32 %v32, %v37
  %v40 = vmul.f32 %v34, %v37
  %v41 = vmul.f32 %v36, %v37
  %v42 = vsub.f32 %v25, %v38
  %v43 = vsub.f32 %v26, %v39
  %v44 = vsub.f32 %v27, %v40
  %v45 = vsub.f32 %v28, %v41
  %v46 = vmul.f32 %v42, %v42
  %v47 = vmul.f32 %v43, %v43
  %v48 = vmul.f32 %v44, %v44
  %v49 = vmul.f32 %v45, %v45
  %50 = vadd.xlane.f32.xlu0 %v46
  %v51 = vpop.xlane.xlu0 %50
  %52 = vadd.xlane.f32.xlu0 %v47
  %v53 = vpop.xlane.xlu0 %52
  %54 = vadd.xlane.f32.xlu0 %v48
  %v55 = vpop.xlane.xlu0 %54
  %56 = vadd.xlane.f32.xlu0 %v49
  %v57 = vpop.xlane.xlu0 %56
  %v58 = vmul.f32 %v51, %v37
  %v59 = vmul.f32 %v53, %v37
  %v60 = vmul.f32 %v55, %v37
  %v61 = vmul.f32 %v57, %v37
  %v62 = vadd.f32 %v58, 1e-05
  %v63 = vadd.f32 %v59, 1e-05
  %v64 = vadd.f32 %v60, 1e-05
  %v65 = vadd.f32 %v61, 1e-05
  %v66 = vrsqrt.pop %v62
  %v67 = vrsqrt.pop %v63
  %v68 = vrsqrt.pop %v64
  %v69 = vrsqrt.pop %v65
  %v70 = vmul.f32 %v42, %v66
  %v71 = vmul.f32 %v43, %v67
  %v72 = vmul.f32 %v44, %v68
  %v73 = vmul.f32 %v45, %v69
  %v74 = vld [vmem:[%s2] sm:$0x1]
  %v76 = vlaneseq
  %v77 = vshrl.u32 %v76, 7
  %v78 = vsub.s32 0, %v77
  %v79 = vrot.slane %v74, %v78
  %v81 = vmul.f32 %v70, %v79
  %v82 = vmul.f32 %v71, %v79
  %v83 = vmul.f32 %v72, %v79
  %v84 = vmul.f32 %v73, %v79
  %v85 = vld [vmem:[%s3] sm:$0x1]
  %v87 = vlaneseq
  %v88 = vshrl.u32 %v87, 7
  %v89 = vsub.s32 0, %v88
  %v90 = vrot.slane %v85, %v89
  %v92 = vadd.f32 %v81, %v90
  %v93 = vadd.f32 %v82, %v90
  %v94 = vadd.f32 %v83, %v90
  %v95 = vadd.f32 %v84, %v90
  %96 = vst [vmem:[%s4] sm:$0xff] %v92
  %97 = vst [vmem:[%s4 + $0x8] sm:$0xff] %v93
  %98 = vst [vmem:[%s4 + $0x10] sm:$0xff] %v94
  %99 = vst [vmem:[%s4 + $0x18] sm:$0xff] %v95
  // Predicated region
  $region18: #{_lambda_.9} parent=0 // pred_check
    _
  $region19: #{_lambda_.9} parent=0 // pred_check_branch
    %101 = sbr.rel (0) target = $region21
  $region20: #{_lambda_.9} parent=0 // pred_region
    _
  $region21: #{_lambda_.9} parent=0 // pred_fallthru
    _
  // Predicated region
  $region22: #{_lambda_.9} parent=0 // pred_check
    _
  $region23: #{_lambda_.9} parent=0 // pred_check_branch
    %103 = sbr.rel (0) target = $region25
  $region24: #{_lambda_.9} parent=0 // pred_region
    _
  $region25: #{_lambda_.9} parent=0 // pred_fallthru
    _

// kernel: _lambda_.11
$region0: #{_lambda_.11}
  #allocation0 [shape = 'u32[]', space=smem, size = 0x4, offset = 0x4, fixed_abs, tag = 'smem constant byte address 0x4 - core index']
  #allocation1 [shape = 'u32[144,128]{1,0:T(1,128)}', space=vmem, size = 0x12000, scoped, tag = 'internal scratch']
  %s0 = inlined_call_operand.vmem [shape: f32[32,128], index: 0, kind: input, shape index: {}]
  %s1 = inlined_call_operand.vmem [shape: f32[32,128], index: 1, kind: input, shape index: {}]
  %s2 = inlined_call_operand.vmem [shape: f32[1,128], index: 2, kind: input, shape index: {}]
  %s3 = inlined_call_operand.vmem [shape: f32[1,128], index: 3, kind: input, shape index: {}]
  %s4 = inlined_call_operand.hbm [shape: f32[32,128], index: 4, kind: output, shape index: {}]
  %s5 = sld [smem:[#allocation0]]
  $region26: #{_lambda_.11} parent=0
    _
  %s7 = ssub.s32 1, %s5
  %s8 = scalar_select 0, %s7, %s5
  $region1: #{_lambda_.11} parent=0
    #allocation2 [shape = 'u8[16384]{0}', space=vmem, size = 0x4000, scoped, tag = 'output window, operand 0, single buffered']
    #allocation3 [shape = 's32[1]{0}', space=sflag, size = 0x4, scoped, tag = 'scoped memory for _lambda_.11']
    %9 = vsyncpa [#allocation3], 0
    // Predicated region
    $region2: #{_lambda_.11} parent=1 // pred_check
      _
    $region3: #{_lambda_.11} parent=1 // pred_check_branch
      %11 = sbr.rel (0) target = $region5
    $region4: #{_lambda_.11} parent=1 // pred_region
      _
    $region5: #{_lambda_.11} parent=1 // pred_fallthru
      _
    // Predicated region
    $region6: #{_lambda_.11} parent=1 // pred_check
      _
    $region7: #{_lambda_.11} parent=1 // pred_check_branch
      %13 = sbr.rel (0) target = $region9
    $region8: #{_lambda_.11} parent=1 // pred_region
      _
    $region9: #{_lambda_.11} parent=1 // pred_fallthru
      _
    // Predicated region
    $region10: #{_lambda_.11} parent=1 // pred_check
      _
    $region11: #{_lambda_.11} parent=1 // pred_check_branch
      %15 = sbr.rel (0) target = $region13
    $region12: #{_lambda_.11} parent=1 // pred_region
      _
    $region13: #{_lambda_.11} parent=1 // pred_fallthru
      _
    // Predicated region
    $region14: #{_lambda_.11} parent=1 // pred_check
      _
    $region15: #{_lambda_.11} parent=1 // pred_check_branch
      %17 = sbr.rel (0) target = $region17
    $region16: #{_lambda_.11} parent=1 // pred_region
      _
    $region17: #{_lambda_.11} parent=1 // pred_fallthru
      _
    %v18 = vld [vmem:[%s0] sm:$0xff]
    %v19 = vld [vmem:[%s0 + $0x8] sm:$0xff]
    %v20 = vld [vmem:[%s0 + $0x10] sm:$0xff]
    %v21 = vld [vmem:[%s0 + $0x18] sm:$0xff]
    %v22 = vld [vmem:[%s1] sm:$0xff]
    %v23 = vld [vmem:[%s1 + $0x8] sm:$0xff]
    %v24 = vld [vmem:[%s1 + $0x10] sm:$0xff]
    %v25 = vld [vmem:[%s1 + $0x18] sm:$0xff]
    %v26 = vadd.f32 %v18, %v22
    %v27 = vadd.f32 %v19, %v23
    %v28 = vadd.f32 %v20, %v24
    %v29 = vadd.f32 %v21, %v25
    %30 = vadd.xlane.f32.xlu0 %v26
    %v31 = vpop.xlane.xlu0 %30
    %32 = vadd.xlane.f32.xlu0 %v27
    %v33 = vpop.xlane.xlu0 %32
    %34 = vadd.xlane.f32.xlu0 %v28
    %v35 = vpop.xlane.xlu0 %34
    %36 = vadd.xlane.f32.xlu0 %v29
    %v37 = vpop.xlane.xlu0 %36
    %v38 = vrcp.pop 128.0
    %v39 = vmul.f32 %v31, %v38
    %v40 = vmul.f32 %v33, %v38
    %v41 = vmul.f32 %v35, %v38
    %v42 = vmul.f32 %v37, %v38
    %v43 = vsub.f32 %v26, %v39
    %v44 = vsub.f32 %v27, %v40
    %v45 = vsub.f32 %v28, %v41
    %v46 = vsub.f32 %v29, %v42
    %v47 = vmul.f32 %v43, %v43
    %v48 = vmul.f32 %v44, %v44
    %v49 = vmul.f32 %v45, %v45
    %v50 = vmul.f32 %v46, %v46
    %51 = vadd.xlane.f32.xlu0 %v47
    %v52 = vpop.xlane.xlu0 %51
    %53 = vadd.xlane.f32.xlu0 %v48
    %v54 = vpop.xlane.xlu0 %53
    %55 = vadd.xlane.f32.xlu0 %v49
    %v56 = vpop.xlane.xlu0 %55
    %57 = vadd.xlane.f32.xlu0 %v50
    %v58 = vpop.xlane.xlu0 %57
    %v59 = vmul.f32 %v52, %v38
    %v60 = vmul.f32 %v54, %v38
    %v61 = vmul.f32 %v56, %v38
    %v62 = vmul.f32 %v58, %v38
    %v63 = vadd.f32 %v59, 1e-05
    %v64 = vadd.f32 %v60, 1e-05
    %v65 = vadd.f32 %v61, 1e-05
    %v66 = vadd.f32 %v62, 1e-05
    %v67 = vrsqrt.pop %v63
    %v68 = vrsqrt.pop %v64
    %v69 = vrsqrt.pop %v65
    %v70 = vrsqrt.pop %v66
    %v71 = vmul.f32 %v43, %v67
    %v72 = vmul.f32 %v44, %v68
    %v73 = vmul.f32 %v45, %v69
    %v74 = vmul.f32 %v46, %v70
    %v75 = vld [vmem:[%s2] sm:$0x1]
    %v77 = vlaneseq
    %v78 = vshrl.u32 %v77, 7
    %v79 = vsub.s32 0, %v78
    %v80 = vrot.slane %v75, %v79
    %v82 = vmul.f32 %v71, %v80
    %v83 = vmul.f32 %v72, %v80
    %v84 = vmul.f32 %v73, %v80
    %v85 = vmul.f32 %v74, %v80
    %v86 = vld [vmem:[%s3] sm:$0x1]
    %v88 = vlaneseq
    %v89 = vshrl.u32 %v88, 7
    %v90 = vsub.s32 0, %v89
    %v91 = vrot.slane %v86, %v90
    %v93 = vadd.f32 %v82, %v91
    %v94 = vadd.f32 %v83, %v91
    %v95 = vadd.f32 %v84, %v91
    %v96 = vadd.f32 %v85, %v91
    %97 = vst [vmem:[#allocation2] sm:$0xff] %v93
    %98 = vst [vmem:[#allocation2 + $0x8] sm:$0xff] %v94
    %99 = vst [vmem:[#allocation2 + $0x10] sm:$0xff] %v95
    %100 = vst [vmem:[#allocation2 + $0x18] sm:$0xff] %v96
    // Predicated region
    $region18: #{_lambda_.11} parent=1 // pred_check
      _
    $region19: #{_lambda_.11} parent=1 // pred_check_branch
      %102 = sbr.rel (0) target = $region21
    $region20: #{_lambda_.11} parent=1 // pred_region
      %s104 = ssub.s32 512, 512
      %105 = vsyncadd [#allocation3], %s104
      %s106 = sshll.u32 [#allocation2], 4
      %s107 = int_to_ptr.vmem [resolvable:$true] %s106
      %112 = dma.vmem_to_hbm [thread:$0]  %s107, 512, %s4, [#allocation3], 128, 128, 8
    $region21: #{_lambda_.11} parent=1 // pred_fallthru
      _
    // Predicated region
    $region22: #{_lambda_.11} parent=1 // pred_check
      _
    $region23: #{_lambda_.11} parent=1 // pred_check_branch
      %114 = sbr.rel (0) target = $region25
    $region24: #{_lambda_.11} parent=1 // pred_region
      %115 = dma.done [#allocation3], 512
    $region25: #{_lambda_.11} parent=1 // pred_fallthru
      _
    %116 = vsyncpa [#allocation3], 1

// kernel: _lambda_.10
$region0: #{_lambda_.10}
  #allocation0 [shape = 'u32[]', space=smem, size = 0x4, offset = 0x4, fixed_abs, tag = 'smem constant byte address 0x4 - core index']
  #allocation1 [shape = 'u32[144,128]{1,0:T(1,128)}', space=vmem, size = 0x12000, scoped, tag = 'internal scratch']
  %s0 = inlined_call_operand.vmem [shape: f32[32,128], index: 0, kind: input, shape index: {}]
  %s1 = inlined_call_operand.vmem [shape: f32[128,256], index: 1, kind: input, shape index: {}]
  %s2 = inlined_call_operand.vmem [shape: f32[1,256], index: 2, kind: input, shape index: {}]
  %s3 = inlined_call_operand.vmem [shape: f32[256,128], index: 3, kind: input, shape index: {}]
  %s4 = inlined_call_operand.vmem [shape: f32[1,128], index: 4, kind: input, shape index: {}]
  %s5 = inlined_call_operand.vmem [shape: f32[32,128], index: 5, kind: output, shape index: {}]
  %s6 = sld [smem:[#allocation0]]
  $region30: #{_lambda_.10} parent=0
    _
  %s8 = ssub.s32 1, %s6
  %s9 = scalar_select 0, %s8, %s6
  // Predicated region
  $region2: #{_lambda_.10} parent=0 // pred_check
    _
  $region3: #{_lambda_.10} parent=0 // pred_check_branch
    %11 = sbr.rel (0) target = $region5
  $region4: #{_lambda_.10} parent=0 // pred_region
    _
  $region5: #{_lambda_.10} parent=0 // pred_fallthru
    _
  // Predicated region
  $region6: #{_lambda_.10} parent=0 // pred_check
    _
  $region7: #{_lambda_.10} parent=0 // pred_check_branch
    %13 = sbr.rel (0) target = $region9
  $region8: #{_lambda_.10} parent=0 // pred_region
    _
  $region9: #{_lambda_.10} parent=0 // pred_fallthru
    _
  // Predicated region
  $region10: #{_lambda_.10} parent=0 // pred_check
    _
  $region11: #{_lambda_.10} parent=0 // pred_check_branch
    %15 = sbr.rel (0) target = $region13
  $region12: #{_lambda_.10} parent=0 // pred_region
    _
  $region13: #{_lambda_.10} parent=0 // pred_fallthru
    _
  // Predicated region
  $region14: #{_lambda_.10} parent=0 // pred_check
    _
  $region15: #{_lambda_.10} parent=0 // pred_check_branch
    %17 = sbr.rel (0) target = $region17
  $region16: #{_lambda_.10} parent=0 // pred_region
    _
  $region17: #{_lambda_.10} parent=0 // pred_fallthru
    _
  // Predicated region
  $region18: #{_lambda_.10} parent=0 // pred_check
    _
  $region19: #{_lambda_.10} parent=0 // pred_check_branch
    %19 = sbr.rel (0) target = $region21
  $region20: #{_lambda_.10} parent=0 // pred_region
    _
  $region21: #{_lambda_.10} parent=0 // pred_fallthru
    _
  %v20 = vld [vmem:[%s0] sm:$0xff]
  %v21 = vld [vmem:[%s0 + $0x8] sm:$0xff]
  %v22 = vld [vmem:[%s0 + $0x10] sm:$0xff]
  %v23 = vld [vmem:[%s0 + $0x18] sm:$0xff]
  %v24 = vld [vmem:[%s1] sm:$0xff]
  %v25 = vld [vmem:[%s1 + $0x8] sm:$0xff]
  %v26 = vld [vmem:[%s1 + $0x10] sm:$0xff]
  %v27 = vld [vmem:[%s1 + $0x18] sm:$0xff]
  %v28 = vld [vmem:[%s1 + $0x20] sm:$0xff]
  %v29 = vld [vmem:[%s1 + $0x28] sm:$0xff]
  %v30 = vld [vmem:[%s1 + $0x30] sm:$0xff]
  %v31 = vld [vmem:[%s1 + $0x38] sm:$0xff]
  %v32 = vld [vmem:[%s1 + $0x40] sm:$0xff]
  %v33 = vld [vmem:[%s1 + $0x48] sm:$0xff]
  %v34 = vld [vmem:[%s1 + $0x50] sm:$0xff]
  %v35 = vld [vmem:[%s1 + $0x58] sm:$0xff]
  %v36 = vld [vmem:[%s1 + $0x60] sm:$0xff]
  %v37 = vld [vmem:[%s1 + $0x68] sm:$0xff]
  %v38 = vld [vmem:[%s1 + $0x70] sm:$0xff]
  %v39 = vld [vmem:[%s1 + $0x78] sm:$0xff]
  %v40 = vld [vmem:[%s1 + $0x80] sm:$0xff]
  %v41 = vld [vmem:[%s1 + $0x88] sm:$0xff]
  %v42 = vld [vmem:[%s1 + $0x90] sm:$0xff]
  %v43 = vld [vmem:[%s1 + $0x98] sm:$0xff]
  %v44 = vld [vmem:[%s1 + $0xa0] sm:$0xff]
  %v45 = vld [vmem:[%s1 + $0xa8] sm:$0xff]
  %v46 = vld [vmem:[%s1 + $0xb0] sm:$0xff]
  %v47 = vld [vmem:[%s1 + $0xb8] sm:$0xff]
  %v48 = vld [vmem:[%s1 + $0xc0] sm:$0xff]
  %v49 = vld [vmem:[%s1 + $0xc8] sm:$0xff]
  %v50 = vld [vmem:[%s1 + $0xd0] sm:$0xff]
  %v51 = vld [vmem:[%s1 + $0xd8] sm:$0xff]
  %v52 = vld [vmem:[%s1 + $0xe0] sm:$0xff]
  %v53 = vld [vmem:[%s1 + $0xe8] sm:$0xff]
  %v54 = vld [vmem:[%s1 + $0xf0] sm:$0xff]
  %v55 = vld [vmem:[%s1 + $0xf8] sm:$0xff]
  %v56 = vld [vmem:[%s2] sm:$0x3]
  %v58 = vlaneseq
  %v59 = vshrl.u32 %v58, 7
  %v60 = vsub.s32 0, %v59
  %v61 = vrot.slane %v56, %v60
  %v62 = vlaneseq
  %v63 = vshrl.u32 %v62, 7
  %v64 = vsub.s32 1, %v63
  %v65 = vrot.slane %v56, %v64
  %68 = vmatprep.subr.mxu0 %v55
  %69 = vmatpush1.msra.mxu0 %v54
  %70 = vmatprep.subr.mxu0 %v53
  %71 = vmatpush1.msra.mxu0 %v52
  %72 = vmatprep.subr.mxu0 %v51
  %73 = vmatpush1.msra.mxu0 %v50
  %74 = vmatprep.subr.mxu0 %v49
  %75 = vmatpush1.msra.mxu0 %v48
  %76 = vmatprep.subr.mxu0 %v47
  %77 = vmatpush1.msra.mxu0 %v46
  %78 = vmatprep.subr.mxu0 %v45
  %79 = vmatpush1.msra.mxu0 %v44
  %80 = vmatprep.subr.mxu0 %v43
  %81 = vmatpush1.msra.mxu0 %v42
  %82 = vmatprep.subr.mxu0 %v41
  %83 = vmatpush1.msra.mxu0 %v40
  %84 = vmatprep.subr.mxu0 %v39
  %85 = vmatpush1.msra.mxu0 %v38
  %86 = vmatprep.subr.mxu0 %v37
  %87 = vmatpush1.msra.mxu0 %v36
  %88 = vmatprep.subr.mxu0 %v35
  %89 = vmatpush1.msra.mxu0 %v34
  %90 = vmatprep.subr.mxu0 %v33
  %91 = vmatpush1.msra.mxu0 %v32
  %92 = vmatprep.subr.mxu0 %v31
  %93 = vmatpush1.msra.mxu0 %v30
  %94 = vmatprep.subr.mxu0 %v29
  %95 = vmatpush1.msra.mxu0 %v28
  %96 = vmatprep.subr.mxu0 %v27
  %97 = vmatpush1.msra.mxu0 %v26
  %98 = vmatprep.subr.mxu0 %v25
  %99 = vmatpush1.msra.mxu0 %v24
  %100 = vmatprep.subr.mxu0 0.0
  %101 = vmatpush2.msra.mxu0 0.0
  %102 = vmatprep.subr.mxu0 0.0
  %103 = vmatpush2.msra.mxu0 0.0
  %104 = vmatprep.subr.mxu0 0.0
  %105 = vmatpush2.msra.mxu0 0.0
  %106 = vmatprep.subr.mxu0 0.0
  %107 = vmatpush2.msra.mxu0 0.0
  %108 = vmatprep.subr.mxu0 0.0
  %109 = vmatpush2.msra.mxu0 0.0
  %110 = vmatprep.subr.mxu0 0.0
  %111 = vmatpush2.msra.mxu0 0.0
  %112 = vmatprep.subr.mxu0 0.0
  %113 = vmatpush2.msra.mxu0 0.0
  %114 = vmatprep.subr.mxu0 0.0
  %115 = vmatpush2.msra.mxu0 0.0
  %116 = vmatprep.subr.mxu0 0.0
  %117 = vmatpush2.msra.mxu0 0.0
  %118 = vmatprep.subr.mxu0 0.0
  %119 = vmatpush2.msra.mxu0 0.0
  %120 = vmatprep.subr.mxu0 0.0
  %121 = vmatpush2.msra.mxu0 0.0
  %122 = vmatprep.subr.mxu0 0.0
  %123 = vmatpush2.msra.mxu0 0.0
  %124 = vmatprep.subr.mxu0 0.0
  %125 = vmatpush2.msra.mxu0 0.0
  %126 = vmatprep.subr.mxu0 0.0
  %127 = vmatpush2.msra.mxu0 0.0
  %128 = vmatprep.subr.mxu0 0.0
  %129 = vmatpush2.msra.mxu0 0.0
  %130 = vmatprep.subr.mxu0 0.0
  %131 = vmatpush2.msra.mxu0 0.0
  %132 = vmatprep.mubr.f32.mxu0 0.0
  %133 = vmatmul.mubr.f32.gmra.mxu0 %v20
  %v134 = vpop.f32.mrf.mxu0
  %v135 = vadd.f32 %v61, %v134
  %v136 = vpop.f32.mrf.mxu0
  %v137 = vadd.f32 %v65, %v136
  %138 = vmatprep.mubr.f32.mxu0 0.0
  %139 = vmatmul.mubr.f32.gmra.mxu0 %v21
  %v140 = vpop.f32.mrf.mxu0
  %v141 = vadd.f32 %v61, %v140
  %v142 = vpop.f32.mrf.mxu0
  %v143 = vadd.f32 %v65, %v142
  %144 = vmatprep.mubr.f32.mxu0 0.0
  %145 = vmatmul.mubr.f32.gmra.mxu0 %v22
  %v146 = vpop.f32.mrf.mxu0
  %v147 = vadd.f32 %v61, %v146
  %v148 = vpop.f32.mrf.mxu0
  %v149 = vadd.f32 %v65, %v148
  %150 = vmatprep.mubr.f32.mxu0 0.0
  %151 = vmatmul.mubr.f32.gmra.mxu0 %v23
  %v152 = vpop.f32.mrf.mxu0
  %v153 = vadd.f32 %v61, %v152
  %v154 = vpop.f32.mrf.mxu0
  %v155 = vadd.f32 %v65, %v154
  %156 = vdwg.mxu0
  %v157 = vmax.f32 %v135, 0.0
  %v158 = vmax.f32 %v137, 0.0
  %v159 = vmax.f32 %v141, 0.0
  %v160 = vmax.f32 %v143, 0.0
  %v161 = vmax.f32 %v147, 0.0
  %v162 = vmax.f32 %v149, 0.0
  %v163 = vmax.f32 %v153, 0.0
  %v164 = vmax.f32 %v155, 0.0
  %v165 = vld [vmem:[%s3] sm:$0xff]
  %v166 = vld [vmem:[%s3 + $0x8] sm:$0xff]
  %v167 = vld [vmem:[%s3 + $0x10] sm:$0xff]
  %v168 = vld [vmem:[%s3 + $0x18] sm:$0xff]
  %v169 = vld [vmem:[%s3 + $0x20] sm:$0xff]
  %v170 = vld [vmem:[%s3 + $0x28] sm:$0xff]
  %v171 = vld [vmem:[%s3 + $0x30] sm:$0xff]
  %v172 = vld [vmem:[%s3 + $0x38] sm:$0xff]
  %v173 = vld [vmem:[%s3 + $0x40] sm:$0xff]
  %v174 = vld [vmem:[%s3 + $0x48] sm:$0xff]
  %v175 = vld [vmem:[%s3 + $0x50] sm:$0xff]
  %v176 = vld [vmem:[%s3 + $0x58] sm:$0xff]
  %v177 = vld [vmem:[%s3 + $0x60] sm:$0xff]
  %v178 = vld [vmem:[%s3 + $0x68] sm:$0xff]
  %v179 = vld [vmem:[%s3 + $0x70] sm:$0xff]
  %v180 = vld [vmem:[%s3 + $0x78] sm:$0xff]
  %v181 = vld [vmem:[%s3 + $0x80] sm:$0xff]
  %v182 = vld [vmem:[%s3 + $0x88] sm:$0xff]
  %v183 = vld [vmem:[%s3 + $0x90] sm:$0xff]
  %v184 = vld [vmem:[%s3 + $0x98] sm:$0xff]
  %v185 = vld [vmem:[%s3 + $0xa0] sm:$0xff]
  %v186 = vld [vmem:[%s3 + $0xa8] sm:$0xff]
  %v187 = vld [vmem:[%s3 + $0xb0] sm:$0xff]
  %v188 = vld [vmem:[%s3 + $0xb8] sm:$0xff]
  %v189 = vld [vmem:[%s3 + $0xc0] sm:$0xff]
  %v190 = vld [vmem:[%s3 + $0xc8] sm:$0xff]
  %v191 = vld [vmem:[%s3 + $0xd0] sm:$0xff]
  %v192 = vld [vmem:[%s3 + $0xd8] sm:$0xff]
  %v193 = vld [vmem:[%s3 + $0xe0] sm:$0xff]
  %v194 = vld [vmem:[%s3 + $0xe8] sm:$0xff]
  %v195 = vld [vmem:[%s3 + $0xf0] sm:$0xff]
  %v196 = vld [vmem:[%s3 + $0xf8] sm:$0xff]
  %v197 = vld [vmem:[%s4] sm:$0x1]
  %v199 = vlaneseq
  %v200 = vshrl.u32 %v199, 7
  %v201 = vsub.s32 0, %v200
  %v202 = vrot.slane %v197, %v201
  %204 = vmatprep.subr.mxu0 0.0
  %205 = vmatpush1.msra.mxu0 %v180
  %206 = vmatprep.subr.mxu0 0.0
  %207 = vmatpush1.msra.mxu0 %v179
  %208 = vmatprep.subr.mxu0 0.0
  %209 = vmatpush1.msra.mxu0 %v178
  %210 = vmatprep.subr.mxu0 0.0
  %211 = vmatpush1.msra.mxu0 %v177
  %212 = vmatprep.subr.mxu0 0.0
  %213 = vmatpush1.msra.mxu0 %v176
  %214 = vmatprep.subr.mxu0 0.0
  %215 = vmatpush1.msra.mxu0 %v175
  %216 = vmatprep.subr.mxu0 0.0
  %217 = vmatpush1.msra.mxu0 %v174
  %218 = vmatprep.subr.mxu0 0.0
  %219 = vmatpush1.msra.mxu0 %v173
  %220 = vmatprep.subr.mxu0 0.0
  %221 = vmatpush1.msra.mxu0 %v172
  %222 = vmatprep.subr.mxu0 0.0
  %223 = vmatpush1.msra.mxu0 %v171
  %224 = vmatprep.subr.mxu0 0.0
  %225 = vmatpush1.msra.mxu0 %v170
  %226 = vmatprep.subr.mxu0 0.0
  %227 = vmatpush1.msra.mxu0 %v169
  %228 = vmatprep.subr.mxu0 0.0
  %229 = vmatpush1.msra.mxu0 %v168
  %230 = vmatprep.subr.mxu0 0.0
  %231 = vmatpush1.msra.mxu0 %v167
  %232 = vmatprep.subr.mxu0 0.0
  %233 = vmatpush1.msra.mxu0 %v166
  %234 = vmatprep.subr.mxu0 0.0
  %235 = vmatpush1.msra.mxu0 %v165
  %236 = vmatprep.subr.mxu0 0.0
  %237 = vmatpush2.msra.mxu0 %v196
  %238 = vmatprep.subr.mxu0 0.0
  %239 = vmatpush2.msra.mxu0 %v195
  %240 = vmatprep.subr.mxu0 0.0
  %241 = vmatpush2.msra.mxu0 %v194
  %242 = vmatprep.subr.mxu0 0.0
  %243 = vmatpush2.msra.mxu0 %v193
  %244 = vmatprep.subr.mxu0 0.0
  %245 = vmatpush2.msra.mxu0 %v192
  %246 = vmatprep.subr.mxu0 0.0
  %247 = vmatpush2.msra.mxu0 %v191
  %248 = vmatprep.subr.mxu0 0.0
  %249 = vmatpush2.msra.mxu0 %v190
  %250 = vmatprep.subr.mxu0 0.0
  %251 = vmatpush2.msra.mxu0 %v189
  %252 = vmatprep.subr.mxu0 0.0
  %253 = vmatpush2.msra.mxu0 %v188
  %254 = vmatprep.subr.mxu0 0.0
  %255 = vmatpush2.msra.mxu0 %v187
  %256 = vmatprep.subr.mxu0 0.0
  %257 = vmatpush2.msra.mxu0 %v186
  %258 = vmatprep.subr.mxu0 0.0
  %259 = vmatpush2.msra.mxu0 %v185
  %260 = vmatprep.subr.mxu0 0.0
  %261 = vmatpush2.msra.mxu0 %v184
  %262 = vmatprep.subr.mxu0 0.0
  %263 = vmatpush2.msra.mxu0 %v183
  %264 = vmatprep.subr.mxu0 0.0
  %265 = vmatpush2.msra.mxu0 %v182
  %266 = vmatprep.subr.mxu0 0.0
  %267 = vmatpush2.msra.mxu0 %v181
  %268 = vmatprep.mubr.f32.mxu0 %v158
  %269 = vmatmul.mubr.f32.gmra.mxu0 %v157
  %v270 = vpop.f32.mrf.mxu0
  %v271 = vadd.f32 %v202, %v270
  %v272 = vpop.f32.mrf.mxu0
  %273 = vmatprep.mubr.f32.mxu0 %v160
  %274 = vmatmul.mubr.f32.gmra.mxu0 %v159
  %v275 = vpop.f32.mrf.mxu0
  %v276 = vadd.f32 %v202, %v275
  %v277 = vpop.f32.mrf.mxu0
  %278 = vmatprep.mubr.f32.mxu0 %v162
  %279 = vmatmul.mubr.f32.gmra.mxu0 %v161
  %v280 = vpop.f32.mrf.mxu0
  %v281 = vadd.f32 %v202, %v280
  %v282 = vpop.f32.mrf.mxu0
  %283 = vmatprep.mubr.f32.mxu0 %v164
  %284 = vmatmul.mubr.f32.gmra.mxu0 %v163
  %v285 = vpop.f32.mrf.mxu0
  %v286 = vadd.f32 %v202, %v285
  %v287 = vpop.f32.mrf.mxu0
  %288 = vdwg.mxu0
  %289 = vst [vmem:[%s5] sm:$0xff] %v271
  %290 = vst [vmem:[%s5 + $0x8] sm:$0xff] %v276
  %291 = vst [vmem:[%s5 + $0x10] sm:$0xff] %v281
  %292 = vst [vmem:[%s5 + $0x18] sm:$0xff] %v286
  // Predicated region
  $region22: #{_lambda_.10} parent=0 // pred_check
    _
  $region23: #{_lambda_.10} parent=0 // pred_check_branch
    %294 = sbr.rel (0) target = $region25
  $region24: #{_lambda_.10} parent=0 // pred_region
    _
  $region25: #{_lambda_.10} parent=0 // pred_fallthru
    _
  // Predicated region
  $region26: #{_lambda_.10} parent=0 // pred_check
    _
  $region27: #{_lambda_.10} parent=0 // pred_check_branch
    %296 = sbr.rel (0) target = $region29
  $region28: #{_lambda_.10} parent=0 // pred_region
    _
  $region29: #{_lambda_.10} parent=0 // pred_fallthru
    _

</llo_original>
